<compile_context>
chip_gen: v6e
topology: v6e:2x2x1
jax: 0.10.0
libtpu: 0.0.40
codegen_flags: <defaults>
</compile_context>

<pallas_src>
import functools

import jax
import jax.numpy as jnp
import numpy as np
from jax.experimental import pallas as pl
from jax.experimental.pallas import tpu as pltpu

_KS = (2, 3, 4, 5)  # conv kernel heights, fixed by the module


def _textcnn_kernel(wid_ref, pid_ref, wfold_ref, bconv_ref, mask_ref,
                    fc1w_ref, fc1b_ref, fc2w_ref, fc2b_ref, out_ref,
                    *, vw, mxu_dtype):
    f32 = jnp.float32
    tb, seq = wid_ref.shape              # (batch rows in tile, seq_len)
    tbs = tb * seq
    vtot = wfold_ref.shape[0]            # word_vocab + pos_vocab
    four_c = fc1w_ref.shape[0]           # 4 * channel
    kmax = wfold_ref.shape[1] // four_c  # 5

    # ---- single merged one-hot over [word | pos] vocab (one iota, one compare) ----------
    lane = jax.lax.broadcasted_iota(jnp.int32, (tb, seq, vtot), 2)
    tgt = jnp.where(lane < vw,
                    wid_ref[...][:, :, None],
                    pid_ref[...][:, :, None] + vw)
    oh = (lane == tgt).astype(f32).reshape(tbs, vtot)

    # ---- folded embedding lookup + all 4 convs / all taps: ONE MXU matmul ---------------
    # Kept in f32: a one-hot matmul selects (and sums two) f32 rows of the folded table
    # exactly, so the fold does not move any bf16 cast point relative to the reference.
    y = jnp.dot(oh, wfold_ref[...], preferred_element_type=f32)     # (tbs, kmax*4C)

    # ---- align taps: z[r] = sum_j y[r + j, tap-group j]  (XLU sublane roll) -------------
    z = y[:, 0:four_c]
    for j in range(1, kmax):
        # np.roll semantics: out[i] = in[(i - shift) % n]; shift = tbs - j -> in[(i+j) % n]
        z = z + pltpu.roll(y[:, j * four_c:(j + 1) * four_c], shift=tbs - j, axis=0)

    z = jnp.maximum(z + bconv_ref[...], 0.0)            # conv bias + ReLU (f32)

    # ---- precomputed (S, 4C) validity mask, then per-example time max-pool --------------
    # Masking to 0 before the max is only correct because ReLU output is >= 0.
    z3 = z.reshape(tb, seq, four_c) * mask_ref[...][None, :, :]
    feat = jnp.max(z3, axis=1)                          # (tb, 4C), lanes = [k=2|k=3|k=4|k=5]

    # ---- classifier head -----------------------------------------------------------------
    h = jnp.tanh(jnp.dot(feat.astype(mxu_dtype), fc1w_ref[...].astype(mxu_dtype),
                         preferred_element_type=f32) + fc1b_ref[...])
    out = jnp.dot(h.astype(mxu_dtype), fc2w_ref[...].astype(mxu_dtype),
                  preferred_element_type=f32) + fc2b_ref[...]
    out_ref[...] = out.astype(out_ref.dtype)


def _round_up(x, m):
    return (x + m - 1) // m * m


def textcnn_forward(params, word_ids, pos_ids, *, tile_b=None, mxu_dtype=jnp.bfloat16):
    """Fused TextCNN forward. word_ids/pos_ids: (B, S) int. Returns (B, class_dim) f32."""
    f32 = jnp.float32
    B, S = word_ids.shape
    C = params['fc1_w'].shape[1]
    class_dim = params['fc2_w'].shape[1]
    word_dim = params['word_emb'].shape[1]
    pos_dim = params['pos_emb'].shape[1]
    D = word_dim + pos_dim
    kmax = max(_KS)
    four_c = len(_KS) * C
    vw = params['word_emb'].shape[0]
    vp = params['pos_emb'].shape[0]
    vtot = vw + vp
    assert S >= kmax, f"sequence length {S} must be >= {kmax}"
    assert params['fc1_w'].shape[0] == four_c

    cast = (lambda a: a) if mxu_dtype == f32 else (lambda a: a.astype(mxu_dtype).astype(f32))

    # Fused conv weight (D, kmax*4C): tap group j holds [w2[:,j].T | w3 | w4 | w5],
    # zero columns where j >= k (keeps wrapped/invalid tap contributions exactly 0).
    cols = []
    for j in range(kmax):
        for k in _KS:
            cols.append(params[f'w{k}'][:, j, :].T if j < k
                        else jnp.zeros((D, C), params[f'w{k}'].dtype))
    w_big = jnp.concatenate(cols, axis=1)                               # (D, kmax*4C)

    # Fold the embedding tables into the conv weight (one-time precompute with the same
    # bf16 cast points the reference uses for embeddings x conv weights).
    w_fold = jnp.concatenate(
        [jnp.dot(cast(params['word_emb']), cast(w_big[:word_dim]),
                 preferred_element_type=f32),
         jnp.dot(cast(params['pos_emb']), cast(w_big[word_dim:]),
                 preferred_element_type=f32)],
        axis=0)                                                         # (vw+vp, kmax*4C)

    b_conv = jnp.concatenate([params[f'b{k}'] for k in _KS], axis=1).astype(f32)  # (1, 4C)

    # Hoisted validity mask: position s is valid for kernel height k iff s <= S - k.
    s_pos = np.arange(S)[:, None]                                       # (S, 1)
    k_col = np.repeat(np.asarray(_KS), C)[None, :]                      # (1, 4C)
    mask = jnp.asarray((s_pos <= S - k_col).astype(np.float32))         # (S, 4C)

    # Batch tiling: target ~2048 rows/tile by default (step-overhead/MXU-fill sweet spot
    # that fits every generation's default scoped VMEM); multiple of 8 rows.
    if tile_b is None:
        tile_b = max(8, (2048 // max(S, 1)) // 8 * 8)
    tile_b = max(8, (int(tile_b) // 8) * 8)
    B8 = _round_up(B, 8)
    tile_b = min(tile_b, B8)
    if tile_b >= B8 and B8 >= 16:
        tile_b = max(8, (B8 // 2) // 8 * 8)      # >=2 grid steps so both v7x TCs get work
    B_pad = _round_up(B, tile_b)
    n_tiles = B_pad // tile_b
    tbs = tile_b * S

    # Dense (B_pad, S) id arrays -> (tile_b, S) blocks (no 1->128 lane padding waste).
    wid = word_ids.astype(jnp.int32)
    pid = pos_ids.astype(jnp.int32)
    if B_pad != B:
        wid = jnp.pad(wid, ((0, B_pad - B), (0, 0)))
        pid = jnp.pad(pid, ((0, B_pad - B), (0, 0)))

    # Rough per-tile VMEM estimate; only override the default scoped limit when needed.
    lane_pad = lambda n: _round_up(max(int(n), 1), 128)
    sub_pad = lambda n: _round_up(max(int(n), 1), 8)
    est = 4 * (tbs * lane_pad(vtot)                       # one-hot
               + 3 * tbs * lane_pad(kmax * four_c)        # y, z, roll temporaries
               + 2 * 2 * tile_b * lane_pad(S)             # id tiles (2 arrays x 2 buffers)
               + 2 * (sub_pad(vtot) * lane_pad(kmax * four_c)
                      + sub_pad(S) * lane_pad(four_c)
                      + sub_pad(four_c) * lane_pad(C)
                      + sub_pad(C) * lane_pad(class_dim)
                      + 3 * lane_pad(four_c)))
    vmem_limit_bytes = None
    if est > 12 * 2 ** 20:
        # Cap at 48 MiB: safely inside v7x's 64 MiB physical VMEM, plenty on v5e/v6e.
        vmem_limit_bytes = int(min(max(2 * est, 32 * 2 ** 20), 48 * 2 ** 20))

    def resident(a):  # constant block index -> fetched once, stays VMEM-resident
        return pl.BlockSpec(a.shape, lambda i: (0, 0))

    in_specs = [
        pl.BlockSpec((tile_b, S), lambda i: (i, 0)),      # word ids (pipelined per tile)
        pl.BlockSpec((tile_b, S), lambda i: (i, 0)),      # pos ids
        resident(w_fold), resident(b_conv), resident(mask),
        resident(params['fc1_w']), resident(params['fc1_b']),
        resident(params['fc2_w']), resident(params['fc2_b']),
    ]
    out_spec = pl.BlockSpec((tile_b, class_dim), lambda i: (i, 0))

    flops = (2 * B_pad * S * vtot * (kmax * four_c)
             + 2 * B_pad * (four_c * C + C * class_dim))
    bytes_accessed = ((wid.size + pid.size) * 4 + B_pad * class_dim * 4
                      + 4 * (w_fold.size + b_conv.size + mask.size)
                      + sum(int(params[k].size) * params[k].dtype.itemsize
                            for k in ('fc1_w', 'fc1_b', 'fc2_w', 'fc2_b')))

    out = pl.pallas_call(
        functools.partial(_textcnn_kernel, vw=vw, mxu_dtype=mxu_dtype),
        out_shape=jax.ShapeDtypeStruct((B_pad, class_dim), jnp.float32),
        grid=(n_tiles,),
        in_specs=in_specs,
        out_specs=out_spec,
        compiler_params=pltpu.CompilerParams(
            dimension_semantics=("parallel",),            # shard batch tiles across TCs
            vmem_limit_bytes=vmem_limit_bytes,
        ),
        cost_estimate=pl.CostEstimate(flops=int(flops), transcendentals=int(B_pad * C),
                                      bytes_accessed=int(bytes_accessed)),
    )(wid, pid, w_fold, b_conv, mask,
      params['fc1_w'], params['fc1_b'], params['fc2_w'], params['fc2_b'])
    return out[:B]


textcnn_apply = jax.jit(textcnn_forward, static_argnames=('tile_b', 'mxu_dtype'))


def init_params(key, channel, class_dim, word_vocab_size, word_dim,
                postag_vocab_size, postag_dim):
    D = word_dim + postag_dim
    ks = jax.random.split(key, 14)
    p = {
        'word_emb': jax.random.normal(ks[0], (word_vocab_size, word_dim), jnp.float32) * 0.1,
        'pos_emb': jax.random.normal(ks[1], (postag_vocab_size, postag_dim), jnp.float32) * 0.1,
    }
    for i, k in enumerate(_KS):
        # Conv2d(1, C, (k, D)) weight (C, 1, k, D) squeezed to (C, k, D); bias (1, C).
        p[f'w{k}'] = jax.random.normal(ks[2 + 2 * i], (channel, k, D), jnp.float32) * 0.1
        p[f'b{k}'] = jax.random.normal(ks[3 + 2 * i], (1, channel), jnp.float32) * 0.1
    # FC weights stored as (in_features, out_features) == PyTorch weight.T
    p['fc1_w'] = jax.random.normal(ks[10], (len(_KS) * channel, channel), jnp.float32) * 0.1
    p['fc1_b'] = jax.random.normal(ks[11], (1, channel), jnp.float32) * 0.1
    p['fc2_w'] = jax.random.normal(ks[12], (channel, class_dim), jnp.float32) * 0.1
    p['fc2_b'] = jax.random.normal(ks[13], (1, class_dim), jnp.float32) * 0.1
    return p


def reference_forward(params, word_ids, pos_ids, mxu_dtype=jnp.bfloat16):
    """Pure-JAX reference matching the PyTorch module, with the same mixed-precision cast
    points as the Pallas kernel (MXU operands in mxu_dtype, f32 accumulation/elementwise)."""
    f32 = jnp.float32
    cast = lambda a: a.astype(mxu_dtype).astype(f32)
    x = jnp.concatenate([params['word_emb'][word_ids], params['pos_emb'][pos_ids]], axis=-1)
    xc = cast(x)                                          # (B, S, D)
    B, S, _ = x.shape
    feats = []
    for k in _KS:
        w = cast(params[f'w{k}'])                         # (C, k, D)
        L = S - k + 1
        conv = params[f'b{k}'][:, None, :]                # (1, 1, C)
        for j in range(k):
            conv = conv + jnp.einsum('bld,cd->blc', xc[:, j:j + L, :], w[:, j, :],
                                     preferred_element_type=f32)
        conv = jnp.maximum(conv, 0.0)                     # ReLU
        feats.append(jnp.max(conv, axis=1))               # max-pool over time -> (B, C)
    feat = jnp.concatenate(feats, axis=-1)                # (B, 4C)
    h = jnp.tanh(jnp.dot(cast(feat), cast(params['fc1_w']),
                         preferred_element_type=f32) + params['fc1_b'])
    out = jnp.dot(cast(h), cast(params['fc2_w']),
                  preferred_element_type=f32) + params['fc2_b']
    return out


if __name__ == "__main__":
    channel = 8
    class_dim = 4
    word_vocab_size = 50
    word_dim = 12
    postag_vocab_size = 20
    postag_dim = 4
    B, S = 16, 16
    tile_b = 8          # -> grid of 2 tiles: exercises the pipelined, parallel batch grid

    key = jax.random.PRNGKey(0)
    k_params, k_word, k_pos = jax.random.split(key, 3)
    params = init_params(k_params, channel, class_dim, word_vocab_size,
                         word_dim, postag_vocab_size, postag_dim)

    word_ids = jax.random.randint(k_word, (B, S), 0, word_vocab_size, dtype=jnp.int32)
    pos_ids = jax.random.randint(k_pos, (B, S), 0, postag_vocab_size, dtype=jnp.int32)

    out = textcnn_apply(params, word_ids, pos_ids, tile_b=tile_b, mxu_dtype=jnp.bfloat16)
    jax.block_until_ready(out)
    assert out.shape == (B, class_dim), out.shape

    ref = jax.jit(reference_forward, static_argnames=('mxu_dtype',))(
        params, word_ids, pos_ids, mxu_dtype=jnp.bfloat16)
    np.testing.assert_allclose(np.asarray(out), np.asarray(ref), rtol=2e-2, atol=2e-3)

    print("KERNEL_OK")
</pallas_src>

<mosaic_0001>
module attributes {stable_mosaic.version = 11 : i64} {
  func.func @_textcnn_kernel(%arg0: i32, %arg1: memref<8x16xi32, #tpu.memory_space<vmem>>, %arg2: memref<8x16xi32, #tpu.memory_space<vmem>>, %arg3: memref<70x160xf32, #tpu.memory_space<vmem>>, %arg4: memref<1x32xf32, #tpu.memory_space<vmem>>, %arg5: memref<16x32xf32, #tpu.memory_space<vmem>>, %arg6: memref<32x8xf32, #tpu.memory_space<vmem>>, %arg7: memref<1x8xf32, #tpu.memory_space<vmem>>, %arg8: memref<8x4xf32, #tpu.memory_space<vmem>>, %arg9: memref<1x4xf32, #tpu.memory_space<vmem>>, %arg10: memref<8x4xf32, #tpu.memory_space<vmem>>) attributes {dimension_semantics = [#tpu.dimension_semantics<parallel>], iteration_bounds = array<i64: 2>, scalar_prefetch = 0 : i64, scratch_operands = 0 : i64, tpu.core_type = #tpu.core_type<tc>, window_params = [{transform_indices = @transform_0, window_bounds = array<i64: 8, 16>}, {transform_indices = @transform_1, window_bounds = array<i64: 8, 16>}, {pipeline_mode = #tpu.pipeline_mode<synchronous>, transform_indices = @transform_2, window_bounds = array<i64: 70, 160>}, {pipeline_mode = #tpu.pipeline_mode<synchronous>, transform_indices = @transform_3, window_bounds = array<i64: 1, 32>}, {pipeline_mode = #tpu.pipeline_mode<synchronous>, transform_indices = @transform_4, window_bounds = array<i64: 16, 32>}, {pipeline_mode = #tpu.pipeline_mode<synchronous>, transform_indices = @transform_5, window_bounds = array<i64: 32, 8>}, {pipeline_mode = #tpu.pipeline_mode<synchronous>, transform_indices = @transform_6, window_bounds = array<i64: 1, 8>}, {pipeline_mode = #tpu.pipeline_mode<synchronous>, transform_indices = @transform_7, window_bounds = array<i64: 8, 4>}, {pipeline_mode = #tpu.pipeline_mode<synchronous>, transform_indices = @transform_8, window_bounds = array<i64: 1, 4>}, {transform_indices = @transform_9, window_bounds = array<i64: 8, 4>}]} {
    %0 = tpu.iota {dimensions = array<i32: 2>} : vector<8x16x70xi32>
    %c50_i32 = arith.constant 50 : i32
    %1 = vector.broadcast %c50_i32 : i32 to vector<8x16x70xi32>
    %2 = arith.cmpi slt, %0, %1 : vector<8x16x70xi32>
    %c0 = arith.constant 0 : index
    %c0_0 = arith.constant 0 : index
    %3 = vector.load %arg1[%c0, %c0_0] : memref<8x16xi32, #tpu.memory_space<vmem>>, vector<8x16xi32>
    %4 = vector.shape_cast %3 : vector<8x16xi32> to vector<8x16x1xi32>
    %c0_1 = arith.constant 0 : index
    %c0_2 = arith.constant 0 : index
    %5 = vector.load %arg2[%c0_1, %c0_2] : memref<8x16xi32, #tpu.memory_space<vmem>>, vector<8x16xi32>
    %6 = vector.shape_cast %5 : vector<8x16xi32> to vector<8x16x1xi32>
    %c50_i32_3 = arith.constant 50 : i32
    %7 = vector.broadcast %c50_i32_3 : i32 to vector<8x16x1xi32>
    %8 = arith.addi %6, %7 : vector<8x16x1xi32>
    %9 = vector.shape_cast %4 : vector<8x16x1xi32> to vector<8x16x1xi32>
    %10 = vector.broadcast %9 : vector<8x16x1xi32> to vector<8x16x70xi32>
    %11 = vector.shape_cast %8 : vector<8x16x1xi32> to vector<8x16x1xi32>
    %12 = vector.broadcast %11 : vector<8x16x1xi32> to vector<8x16x70xi32>
    %13 = arith.select %2, %10, %12 : vector<8x16x70xi1>, vector<8x16x70xi32>
    %14 = arith.cmpi eq, %0, %13 : vector<8x16x70xi32>
    %15 = arith.extui %14 : vector<8x16x70xi1> to vector<8x16x70xi32>
    %16 = arith.sitofp %15 : vector<8x16x70xi32> to vector<8x16x70xf32>
    %17 = vector.shape_cast %16 : vector<8x16x70xf32> to vector<128x70xf32>
    %c0_4 = arith.constant 0 : index
    %c0_5 = arith.constant 0 : index
    %18 = vector.load %arg3[%c0_4, %c0_5] : memref<70x160xf32, #tpu.memory_space<vmem>>, vector<70x160xf32>
    %cst = arith.constant dense<0.000000e+00> : vector<128x160xf32>
    %19 = tpu.matmul %17, %18, %cst {dimension_numbers = #tpu.dot_dimension_numbers<[1], [0], [0], [1], [0, 0, 1, 1], [], []>} : vector<128x70xf32>, vector<70x160xf32>, vector<128x160xf32> -> vector<128x160xf32>
    %20 = vector.extract_strided_slice %19 {offsets = [0, 0], sizes = [128, 32], strides = [1, 1]} : vector<128x160xf32> to vector<128x32xf32>
    %21 = vector.extract_strided_slice %19 {offsets = [0, 32], sizes = [128, 32], strides = [1, 1]} : vector<128x160xf32> to vector<128x32xf32>
    %c127_i32 = arith.constant 127 : i32
    %22 = tpu.dynamic_rotate %21 by %c127_i32 dim 0 : vector<128x32xf32>, i32 -> vector<128x32xf32>
    %23 = arith.addf %20, %22 : vector<128x32xf32>
    %24 = vector.extract_strided_slice %19 {offsets = [0, 64], sizes = [128, 32], strides = [1, 1]} : vector<128x160xf32> to vector<128x32xf32>
    %c126_i32 = arith.constant 126 : i32
    %25 = tpu.dynamic_rotate %24 by %c126_i32 dim 0 : vector<128x32xf32>, i32 -> vector<128x32xf32>
    %26 = arith.addf %23, %25 : vector<128x32xf32>
    %27 = vector.extract_strided_slice %19 {offsets = [0, 96], sizes = [128, 32], strides = [1, 1]} : vector<128x160xf32> to vector<128x32xf32>
    %c125_i32 = arith.constant 125 : i32
    %28 = tpu.dynamic_rotate %27 by %c125_i32 dim 0 : vector<128x32xf32>, i32 -> vector<128x32xf32>
    %29 = arith.addf %26, %28 : vector<128x32xf32>
    %30 = vector.extract_strided_slice %19 {offsets = [0, 128], sizes = [128, 32], strides = [1, 1]} : vector<128x160xf32> to vector<128x32xf32>
    %c124_i32 = arith.constant 124 : i32
    %31 = tpu.dynamic_rotate %30 by %c124_i32 dim 0 : vector<128x32xf32>, i32 -> vector<128x32xf32>
    %32 = arith.addf %29, %31 : vector<128x32xf32>
    %c0_6 = arith.constant 0 : index
    %c0_7 = arith.constant 0 : index
    %33 = vector.load %arg4[%c0_6, %c0_7] : memref<1x32xf32, #tpu.memory_space<vmem>>, vector<1x32xf32>
    %34 = vector.broadcast %33 : vector<1x32xf32> to vector<128x32xf32>
    %35 = arith.addf %32, %34 : vector<128x32xf32>
    %cst_8 = arith.constant 0.000000e+00 : f32
    %36 = vector.broadcast %cst_8 : f32 to vector<128x32xf32>
    %37 = arith.maximumf %35, %36 : vector<128x32xf32>
    %38 = vector.shape_cast %37 : vector<128x32xf32> to vector<8x16x32xf32>
    %c0_9 = arith.constant 0 : index
    %c0_10 = arith.constant 0 : index
    %39 = vector.load %arg5[%c0_9, %c0_10] : memref<16x32xf32, #tpu.memory_space<vmem>>, vector<16x32xf32>
    %40 = vector.shape_cast %39 : vector<16x32xf32> to vector<1x16x32xf32>
    %41 = vector.broadcast %40 : vector<1x16x32xf32> to vector<8x16x32xf32>
    %42 = arith.mulf %38, %41 : vector<8x16x32xf32>
    %cst_11 = arith.constant dense<0xFF800000> : vector<8x32xf32>
    %43 = vector.multi_reduction <maximumf>, %42, %cst_11 [1] : vector<8x16x32xf32> to vector<8x32xf32>
    %44 = arith.truncf %43 : vector<8x32xf32> to vector<8x32xbf16>
    %c0_12 = arith.constant 0 : index
    %c0_13 = arith.constant 0 : index
    %45 = vector.load %arg6[%c0_12, %c0_13] : memref<32x8xf32, #tpu.memory_space<vmem>>, vector<32x8xf32>
    %46 = arith.truncf %45 : vector<32x8xf32> to vector<32x8xbf16>
    %cst_14 = arith.constant dense<0.000000e+00> : vector<8x8xf32>
    %47 = tpu.matmul %44, %46, %cst_14 {dimension_numbers = #tpu.dot_dimension_numbers<[1], [0], [0], [1], [0, 0, 1, 1], [], []>} : vector<8x32xbf16>, vector<32x8xbf16>, vector<8x8xf32> -> vector<8x8xf32>
    %c0_15 = arith.constant 0 : index
    %c0_16 = arith.constant 0 : index
    %48 = vector.load %arg7[%c0_15, %c0_16] : memref<1x8xf32, #tpu.memory_space<vmem>>, vector<1x8xf32>
    %49 = vector.broadcast %48 : vector<1x8xf32> to vector<8x8xf32>
    %50 = arith.addf %47, %49 : vector<8x8xf32>
    %51 = math.tanh %50 : vector<8x8xf32>
    %52 = arith.truncf %51 : vector<8x8xf32> to vector<8x8xbf16>
    %c0_17 = arith.constant 0 : index
    %c0_18 = arith.constant 0 : index
    %53 = vector.load %arg8[%c0_17, %c0_18] : memref<8x4xf32, #tpu.memory_space<vmem>>, vector<8x4xf32>
    %54 = arith.truncf %53 : vector<8x4xf32> to vector<8x4xbf16>
    %cst_19 = arith.constant dense<0.000000e+00> : vector<8x4xf32>
    %55 = tpu.matmul %52, %54, %cst_19 {dimension_numbers = #tpu.dot_dimension_numbers<[1], [0], [0], [1], [0, 0, 1, 1], [], []>} : vector<8x8xbf16>, vector<8x4xbf16>, vector<8x4xf32> -> vector<8x4xf32>
    %c0_20 = arith.constant 0 : index
    %c0_21 = arith.constant 0 : index
    %56 = vector.load %arg9[%c0_20, %c0_21] : memref<1x4xf32, #tpu.memory_space<vmem>>, vector<1x4xf32>
    %57 = vector.broadcast %56 : vector<1x4xf32> to vector<8x4xf32>
    %58 = arith.addf %55, %57 : vector<8x4xf32>
    %c0_22 = arith.constant 0 : index
    %c0_23 = arith.constant 0 : index
    %59 = vector.load %arg10[%c0_22, %c0_23] : memref<8x4xf32, #tpu.memory_space<vmem>>, vector<8x4xf32>
    tpu.vector_store %arg10[%c0_22, %c0_23], %58 {strides = array<i32>} : memref<8x4xf32, #tpu.memory_space<vmem>>, vector<8x4xf32>,
    return
  }
  func.func @transform_0(%arg0: i32) -> (i32, i32) {
    %c0_i32 = arith.constant 0 : i32
    %c0_i32_0 = arith.constant 0 : i32
    return %arg0, %c0_i32 : i32, i32
  }
  func.func @transform_1(%arg0: i32) -> (i32, i32) {
    %c0_i32 = arith.constant 0 : i32
    %c0_i32_0 = arith.constant 0 : i32
    return %arg0, %c0_i32 : i32, i32
  }
  func.func @transform_2(%arg0: i32) -> (i32, i32) {
    %c0_i32 = arith.constant 0 : i32
    %c0_i32_0 = arith.constant 0 : i32
    %c0_i32_1 = arith.constant 0 : i32
    return %c0_i32, %c0_i32_0 : i32, i32
  }
  func.func @transform_3(%arg0: i32) -> (i32, i32) {
    %c0_i32 = arith.constant 0 : i32
    %c0_i32_0 = arith.constant 0 : i32
    %c0_i32_1 = arith.constant 0 : i32
    return %c0_i32, %c0_i32_0 : i32, i32
  }
  func.func @transform_4(%arg0: i32) -> (i32, i32) {
    %c0_i32 = arith.constant 0 : i32
    %c0_i32_0 = arith.constant 0 : i32
    %c0_i32_1 = arith.constant 0 : i32
    return %c0_i32, %c0_i32_0 : i32, i32
  }
  func.func @transform_5(%arg0: i32) -> (i32, i32) {
    %c0_i32 = arith.constant 0 : i32
    %c0_i32_0 = arith.constant 0 : i32
    %c0_i32_1 = arith.constant 0 : i32
    return %c0_i32, %c0_i32_0 : i32, i32
  }
  func.func @transform_6(%arg0: i32) -> (i32, i32) {
    %c0_i32 = arith.constant 0 : i32
    %c0_i32_0 = arith.constant 0 : i32
    %c0_i32_1 = arith.constant 0 : i32
    return %c0_i32, %c0_i32_0 : i32, i32
  }
  func.func @transform_7(%arg0: i32) -> (i32, i32) {
    %c0_i32 = arith.constant 0 : i32
    %c0_i32_0 = arith.constant 0 : i32
    %c0_i32_1 = arith.constant 0 : i32
    return %c0_i32, %c0_i32_0 : i32, i32
  }
  func.func @transform_8(%arg0: i32) -> (i32, i32) {
    %c0_i32 = arith.constant 0 : i32
    %c0_i32_0 = arith.constant 0 : i32
    %c0_i32_1 = arith.constant 0 : i32
    return %c0_i32, %c0_i32_0 : i32, i32
  }
  func.func @transform_9(%arg0: i32) -> (i32, i32) {
    %c0_i32 = arith.constant 0 : i32
    %c0_i32_0 = arith.constant 0 : i32
    return %arg0, %c0_i32 : i32, i32
  }
}

</mosaic_0001>

<llo_original>
// kernel: textcnn_forward.1
$region0: #{textcnn_forward.1}
  #allocation0 [shape = 'u32[]', space=smem, size = 0x4, offset = 0x4, fixed_abs, tag = 'smem constant byte address 0x4 - core index']
  #allocation1 [shape = 'u32[144,128]{1,0:T(1,128)}', space=vmem, size = 0x12000, scoped, tag = 'internal scratch']
  %s0 = inlined_call_operand.vmem [shape: s32[16,16], index: 0, kind: input, shape index: {}]
  %s1 = inlined_call_operand.vmem [shape: s32[16,16], index: 1, kind: input, shape index: {}]
  %s2 = inlined_call_operand.vmem [shape: f32[70,160], index: 2, kind: input, shape index: {}]
  %s3 = inlined_call_operand.vmem [shape: f32[1,32], index: 3, kind: input, shape index: {}]
  %s4 = inlined_call_operand.vmem [shape: f32[16,32], index: 4, kind: input, shape index: {}]
  %s5 = inlined_call_operand.vmem [shape: f32[32,8], index: 5, kind: input, shape index: {}]
  %s6 = inlined_call_operand.vmem [shape: f32[1,8], index: 6, kind: input, shape index: {}]
  %s7 = inlined_call_operand.vmem [shape: f32[8,4], index: 7, kind: input, shape index: {}]
  %s8 = inlined_call_operand.vmem [shape: f32[1,4], index: 8, kind: input, shape index: {}]
  %s9 = inlined_call_operand.vmem [shape: f32[16,4], index: 9, kind: output, shape index: {}]
  %s10 = sld [smem:[#allocation0]]
  $region69: #{textcnn_forward.1} parent=0
    _
  %s12 = ssub.s32 1, %s10
  %s13 = scalar_select 0, %s12, %s10
  loop: start=0, step=1, limit=4
  $region2: #{textcnn_forward.1} parent=0 // loop_pre_header
    _
  $region3: #{textcnn_forward.1} parent=0 // loop_header
    %s15 = sphi 0, %s19
    %p16 = scmp.ge.s32.totalorder %s15, 4
    %s25 = sphi 0, %s27
    %s28 = sphi 0, %s25
    %s29 = sphi 0, %s28
    %s45 = sphi 0, %s29
    %s51 = sphi 0, %s53
    %s54 = sphi 0, %s51
    %s55 = sphi 0, %s54
    %s71 = sphi 0, %s55
    %s75 = sphi 0, %s75
    %s77 = sphi 0, %s75
    %s78 = sphi 0, %s77
    %s92 = sphi 0, %s78
    %s96 = sphi 0, %s96
    %s98 = sphi 0, %s96
    %s99 = sphi 0, %s98
    %s113 = sphi 0, %s99
    %s117 = sphi 0, %s117
    %s119 = sphi 0, %s117
    %s120 = sphi 0, %s119
    %s134 = sphi 0, %s120
    %s138 = sphi 0, %s138
    %s140 = sphi 0, %s138
    %s141 = sphi 0, %s140
    %s155 = sphi 0, %s141
    %s159 = sphi 0, %s159
    %s161 = sphi 0, %s159
    %s162 = sphi 0, %s161
    %s176 = sphi 0, %s162
    %s180 = sphi 0, %s180
    %s182 = sphi 0, %s180
    %s183 = sphi 0, %s182
    %s197 = sphi 0, %s183
    %s201 = sphi 0, %s201
    %s203 = sphi 0, %s201
    %s204 = sphi 0, %s203
    %s218 = sphi 0, %s204
    %s224 = sphi 0, %s226
    %s227 = sphi 0, %s224
    %s228 = sphi 0, %s227
    %s244 = sphi 0, %s228
  $region4: #{textcnn_forward.1} parent=0 // loop_header_branch
    %18 = sbr.rel (%p16) target = $region8
  $region5: #{textcnn_forward.1} parent=0 // loop_body
    %s20 = ssub.s32 %s15, 1
    %s21 = ssub.s32 %s15, 2
    %s22 = sadd.s32 %s15, 1
    %s23 = ssub.s32 %s15, %s22
    %p24 = scmp.eq.s32.totalorder %s23, 0
    %s26 = sadd.s32 %s25, 1
    %s27 = scalar_select %p24, %s25, %s26
    %p30 = pneg %p24
    %p31 = scmp.eq.s32.totalorder %s15, 1
    %p32 = por %p30, %p31
    %p33 = scmp.ne.s32.totalorder %s25, %s28
    %p34 = scmp.eq.s32.totalorder %s15, 0
    %p35 = por %p33, %p34
    %p36 = scmp.ne.s32.totalorder %s25, %s28
    %p37 = scmp.eq.s32.totalorder %s20, 1
    %p38 = por %p36, %p37
    %p39 = scmp.ne.s32.totalorder %s28, %s29
    %p40 = scmp.eq.s32.totalorder %s20, 0
    %p41 = por %p39, %p40
    %p42 = scmp.ne.s32.totalorder %s28, %s29
    %p43 = scmp.eq.s32.totalorder %s21, 1
    %p44 = por %p42, %p43
    %p46 = scmp.ne.s32.totalorder %s29, %s45
    %p47 = scmp.eq.s32.totalorder %s21, 0
    %p48 = por %p46, %p47
    %s49 = ssub.s32 %s15, %s22
    %p50 = scmp.eq.s32.totalorder %s49, 0
    %s52 = sadd.s32 %s51, 1
    %s53 = scalar_select %p50, %s51, %s52
    %p56 = pneg %p50
    %p57 = scmp.eq.s32.totalorder %s15, 1
    %p58 = por %p56, %p57
    %p59 = scmp.ne.s32.totalorder %s51, %s54
    %p60 = scmp.eq.s32.totalorder %s15, 0
    %p61 = por %p59, %p60
    %p62 = scmp.ne.s32.totalorder %s51, %s54
    %p63 = scmp.eq.s32.totalorder %s20, 1
    %p64 = por %p62, %p63
    %p65 = scmp.ne.s32.totalorder %s54, %s55
    %p66 = scmp.eq.s32.totalorder %s20, 0
    %p67 = por %p65, %p66
    %p68 = scmp.ne.s32.totalorder %s54, %s55
    %p69 = scmp.eq.s32.totalorder %s21, 1
    %p70 = por %p68, %p69
    %p72 = scmp.ne.s32.totalorder %s55, %s71
    %p73 = scmp.eq.s32.totalorder %s21, 0
    %p74 = por %p72, %p73
    %s76 = sadd.s32 %s75, 1
    %p79 = scmp.eq.s32.totalorder %s15, 1
    %p80 = scmp.ne.s32.totalorder %s75, %s77
    %p81 = scmp.eq.s32.totalorder %s15, 0
    %p82 = por %p80, %p81
    %p83 = scmp.ne.s32.totalorder %s75, %s77
    %p84 = scmp.eq.s32.totalorder %s20, 1
    %p85 = por %p83, %p84
    %p86 = scmp.ne.s32.totalorder %s77, %s78
    %p87 = scmp.eq.s32.totalorder %s20, 0
    %p88 = por %p86, %p87
    %p89 = scmp.ne.s32.totalorder %s77, %s78
    %p90 = scmp.eq.s32.totalorder %s21, 1
    %p91 = por %p89, %p90
    %p93 = scmp.ne.s32.totalorder %s78, %s92
    %p94 = scmp.eq.s32.totalorder %s21, 0
    %p95 = por %p93, %p94
    %s97 = sadd.s32 %s96, 1
    %p100 = scmp.eq.s32.totalorder %s15, 1
    %p101 = scmp.ne.s32.totalorder %s96, %s98
    %p102 = scmp.eq.s32.totalorder %s15, 0
    %p103 = por %p101, %p102
    %p104 = scmp.ne.s32.totalorder %s96, %s98
    %p105 = scmp.eq.s32.totalorder %s20, 1
    %p106 = por %p104, %p105
    %p107 = scmp.ne.s32.totalorder %s98, %s99
    %p108 = scmp.eq.s32.totalorder %s20, 0
    %p109 = por %p107, %p108
    %p110 = scmp.ne.s32.totalorder %s98, %s99
    %p111 = scmp.eq.s32.totalorder %s21, 1
    %p112 = por %p110, %p111
    %p114 = scmp.ne.s32.totalorder %s99, %s113
    %p115 = scmp.eq.s32.totalorder %s21, 0
    %p116 = por %p114, %p115
    %s118 = sadd.s32 %s117, 1
    %p121 = scmp.eq.s32.totalorder %s15, 1
    %p122 = scmp.ne.s32.totalorder %s117, %s119
    %p123 = scmp.eq.s32.totalorder %s15, 0
    %p124 = por %p122, %p123
    %p125 = scmp.ne.s32.totalorder %s117, %s119
    %p126 = scmp.eq.s32.totalorder %s20, 1
    %p127 = por %p125, %p126
    %p128 = scmp.ne.s32.totalorder %s119, %s120
    %p129 = scmp.eq.s32.totalorder %s20, 0
    %p130 = por %p128, %p129
    %p131 = scmp.ne.s32.totalorder %s119, %s120
    %p132 = scmp.eq.s32.totalorder %s21, 1
    %p133 = por %p131, %p132
    %p135 = scmp.ne.s32.totalorder %s120, %s134
    %p136 = scmp.eq.s32.totalorder %s21, 0
    %p137 = por %p135, %p136
    %s139 = sadd.s32 %s138, 1
    %p142 = scmp.eq.s32.totalorder %s15, 1
    %p143 = scmp.ne.s32.totalorder %s138, %s140
    %p144 = scmp.eq.s32.totalorder %s15, 0
    %p145 = por %p143, %p144
    %p146 = scmp.ne.s32.totalorder %s138, %s140
    %p147 = scmp.eq.s32.totalorder %s20, 1
    %p148 = por %p146, %p147
    %p149 = scmp.ne.s32.totalorder %s140, %s141
    %p150 = scmp.eq.s32.totalorder %s20, 0
    %p151 = por %p149, %p150
    %p152 = scmp.ne.s32.totalorder %s140, %s141
    %p153 = scmp.eq.s32.totalorder %s21, 1
    %p154 = por %p152, %p153
    %p156 = scmp.ne.s32.totalorder %s141, %s155
    %p157 = scmp.eq.s32.totalorder %s21, 0
    %p158 = por %p156, %p157
    %s160 = sadd.s32 %s159, 1
    %p163 = scmp.eq.s32.totalorder %s15, 1
    %p164 = scmp.ne.s32.totalorder %s159, %s161
    %p165 = scmp.eq.s32.totalorder %s15, 0
    %p166 = por %p164, %p165
    %p167 = scmp.ne.s32.totalorder %s159, %s161
    %p168 = scmp.eq.s32.totalorder %s20, 1
    %p169 = por %p167, %p168
    %p170 = scmp.ne.s32.totalorder %s161, %s162
    %p171 = scmp.eq.s32.totalorder %s20, 0
    %p172 = por %p170, %p171
    %p173 = scmp.ne.s32.totalorder %s161, %s162
    %p174 = scmp.eq.s32.totalorder %s21, 1
    %p175 = por %p173, %p174
    %p177 = scmp.ne.s32.totalorder %s162, %s176
    %p178 = scmp.eq.s32.totalorder %s21, 0
    %p179 = por %p177, %p178
    %s181 = sadd.s32 %s180, 1
    %p184 = scmp.eq.s32.totalorder %s15, 1
    %p185 = scmp.ne.s32.totalorder %s180, %s182
    %p186 = scmp.eq.s32.totalorder %s15, 0
    %p187 = por %p185, %p186
    %p188 = scmp.ne.s32.totalorder %s180, %s182
    %p189 = scmp.eq.s32.totalorder %s20, 1
    %p190 = por %p188, %p189
    %p191 = scmp.ne.s32.totalorder %s182, %s183
    %p192 = scmp.eq.s32.totalorder %s20, 0
    %p193 = por %p191, %p192
    %p194 = scmp.ne.s32.totalorder %s182, %s183
    %p195 = scmp.eq.s32.totalorder %s21, 1
    %p196 = por %p194, %p195
    %p198 = scmp.ne.s32.totalorder %s183, %s197
    %p199 = scmp.eq.s32.totalorder %s21, 0
    %p200 = por %p198, %p199
    %s202 = sadd.s32 %s201, 1
    %p205 = scmp.eq.s32.totalorder %s15, 1
    %p206 = scmp.ne.s32.totalorder %s201, %s203
    %p207 = scmp.eq.s32.totalorder %s15, 0
    %p208 = por %p206, %p207
    %p209 = scmp.ne.s32.totalorder %s201, %s203
    %p210 = scmp.eq.s32.totalorder %s20, 1
    %p211 = por %p209, %p210
    %p212 = scmp.ne.s32.totalorder %s203, %s204
    %p213 = scmp.eq.s32.totalorder %s20, 0
    %p214 = por %p212, %p213
    %p215 = scmp.ne.s32.totalorder %s203, %s204
    %p216 = scmp.eq.s32.totalorder %s21, 1
    %p217 = por %p215, %p216
    %p219 = scmp.ne.s32.totalorder %s204, %s218
    %p220 = scmp.eq.s32.totalorder %s21, 0
    %p221 = por %p219, %p220
    %s222 = ssub.s32 %s15, %s22
    %p223 = scmp.eq.s32.totalorder %s222, 0
    %s225 = sadd.s32 %s224, 1
    %s226 = scalar_select %p223, %s224, %s225
    %p229 = pneg %p223
    %p230 = scmp.eq.s32.totalorder %s15, 1
    %p231 = por %p229, %p230
    %p232 = scmp.ne.s32.totalorder %s224, %s227
    %p233 = scmp.eq.s32.totalorder %s15, 0
    %p234 = por %p232, %p233
    %p235 = scmp.ne.s32.totalorder %s224, %s227
    %p236 = scmp.eq.s32.totalorder %s20, 1
    %p237 = por %p235, %p236
    %p238 = scmp.ne.s32.totalorder %s227, %s228
    %p239 = scmp.eq.s32.totalorder %s20, 0
    %p240 = por %p238, %p239
    %p241 = scmp.ne.s32.totalorder %s227, %s228
    %p242 = scmp.eq.s32.totalorder %s21, 1
    %p243 = por %p241, %p242
    %p245 = scmp.ne.s32.totalorder %s228, %s244
    %p246 = scmp.eq.s32.totalorder %s21, 0
    %p247 = por %p245, %p246
    %p248 = scmp.le.s32.totalorder 1, %s15
    %p249 = scmp.lt.s32.totalorder %s15, 3
    %p250 = pnand %p248, %p249
    %p251 = pneg %p250
    // Predicated region
    $region9: #{textcnn_forward.1} parent=5 // pred_check
      _
    $region10: #{textcnn_forward.1} parent=5 // pred_check_branch
      %253 = sbr.rel (%p250) target = $region12
    $region11: #{textcnn_forward.1} parent=5 // pred_region
      %s254 = ssub.s32 %s15, 1
      // Predicated region
      $region13: #{textcnn_forward.1} parent=11 // pred_check
        %p255 = pneg %p88
      $region14: #{textcnn_forward.1} parent=11 // pred_check_branch
        %257 = sbr.rel (%p255) target = $region16
      $region15: #{textcnn_forward.1} parent=11 // pred_region
        _
      $region16: #{textcnn_forward.1} parent=11 // pred_fallthru
        _
      // Predicated region
      $region17: #{textcnn_forward.1} parent=11 // pred_check
        %p258 = pneg %p109
      $region18: #{textcnn_forward.1} parent=11 // pred_check_branch
        %260 = sbr.rel (%p258) target = $region20
      $region19: #{textcnn_forward.1} parent=11 // pred_region
        _
      $region20: #{textcnn_forward.1} parent=11 // pred_fallthru
        _
      // Predicated region
      $region21: #{textcnn_forward.1} parent=11 // pred_check
        %p261 = pneg %p130
      $region22: #{textcnn_forward.1} parent=11 // pred_check_branch
        %263 = sbr.rel (%p261) target = $region24
      $region23: #{textcnn_forward.1} parent=11 // pred_region
        _
      $region24: #{textcnn_forward.1} parent=11 // pred_fallthru
        _
      // Predicated region
      $region25: #{textcnn_forward.1} parent=11 // pred_check
        %p264 = pneg %p151
      $region26: #{textcnn_forward.1} parent=11 // pred_check_branch
        %266 = sbr.rel (%p264) target = $region28
      $region27: #{textcnn_forward.1} parent=11 // pred_region
        _
      $region28: #{textcnn_forward.1} parent=11 // pred_fallthru
        _
      // Predicated region
      $region29: #{textcnn_forward.1} parent=11 // pred_check
        %p267 = pneg %p172
      $region30: #{textcnn_forward.1} parent=11 // pred_check_branch
        %269 = sbr.rel (%p267) target = $region32
      $region31: #{textcnn_forward.1} parent=11 // pred_region
        _
      $region32: #{textcnn_forward.1} parent=11 // pred_fallthru
        _
      // Predicated region
      $region33: #{textcnn_forward.1} parent=11 // pred_check
        %p270 = pneg %p193
      $region34: #{textcnn_forward.1} parent=11 // pred_check_branch
        %272 = sbr.rel (%p270) target = $region36
      $region35: #{textcnn_forward.1} parent=11 // pred_region
        _
      $region36: #{textcnn_forward.1} parent=11 // pred_fallthru
        _
      // Predicated region
      $region37: #{textcnn_forward.1} parent=11 // pred_check
        %p273 = pneg %p214
      $region38: #{textcnn_forward.1} parent=11 // pred_check_branch
        %275 = sbr.rel (%p273) target = $region40
      $region39: #{textcnn_forward.1} parent=11 // pred_region
        _
      $region40: #{textcnn_forward.1} parent=11 // pred_fallthru
        _
    $region12: #{textcnn_forward.1} parent=5 // pred_fallthru
      _
    %p276 = scmp.lt.s32.totalorder %s15, 2
    // Predicated region
    $region41: #{textcnn_forward.1} parent=5 // pred_check
      %p277 = pneg %p276
    $region42: #{textcnn_forward.1} parent=5 // pred_check_branch
      %279 = sbr.rel (%p277) target = $region44
    $region43: #{textcnn_forward.1} parent=5 // pred_region
      // Predicated region
      $region45: #{textcnn_forward.1} parent=43 // pred_check
        %p280 = pneg %p35
      $region46: #{textcnn_forward.1} parent=43 // pred_check_branch
        %282 = sbr.rel (%p280) target = $region48
      $region47: #{textcnn_forward.1} parent=43 // pred_region
        %p283 = scmp.lt.s32.totalorder %s15, 1
        %s284 = scalar_select %p283, %s15, 1
        %s285 = smul.addr %s284, 8
        %s286 = scalar_lea.vmem %s0, %s285
      $region48: #{textcnn_forward.1} parent=43 // pred_fallthru
        _
      // Predicated region
      $region49: #{textcnn_forward.1} parent=43 // pred_check
        %p287 = pneg %p61
      $region50: #{textcnn_forward.1} parent=43 // pred_check_branch
        %289 = sbr.rel (%p287) target = $region52
      $region51: #{textcnn_forward.1} parent=43 // pred_region
        %p290 = scmp.lt.s32.totalorder %s15, 1
        %s291 = scalar_select %p290, %s15, 1
        %s292 = smul.addr %s291, 8
        %s293 = scalar_lea.vmem %s1, %s292
      $region52: #{textcnn_forward.1} parent=43 // pred_fallthru
        _
    $region44: #{textcnn_forward.1} parent=5 // pred_fallthru
      _
    %p294 = scmp.le.s32.totalorder 1, %s15
    %p295 = scmp.lt.s32.totalorder %s15, 3
    %p296 = pnand %p294, %p295
    %p297 = pneg %p296
    // Predicated region
    $region53: #{textcnn_forward.1} parent=5 // pred_check
      _
    $region54: #{textcnn_forward.1} parent=5 // pred_check_branch
      %299 = sbr.rel (%p296) target = $region56
    $region55: #{textcnn_forward.1} parent=5 // pred_region
      %s300 = ssub.s32 %s15, 1
      %p301 = scmp.lt.s32.totalorder %s20, 1
      %s302 = scalar_select %p301, %s20, 1
      %s303 = smul.addr %s302, 8
      %s304 = scalar_lea.vmem %s0, %s303
      %p305 = pneg %p41
      %p306 = pneg %p38
      %p307 = scmp.lt.s32.totalorder %s20, 1
      %s308 = scalar_select %p307, %s20, 1
      %s309 = smul.addr %s308, 8
      %s310 = scalar_lea.vmem %s1, %s309
      %p311 = pneg %p67
      %p312 = pneg %p64
      %p313 = pneg %p88
      %p314 = pneg %p85
      %p315 = pneg %p109
      %p316 = pneg %p106
      %p317 = pneg %p130
      %p318 = pneg %p127
      %p319 = pneg %p151
      %p320 = pneg %p148
      %p321 = pneg %p172
      %p322 = pneg %p169
      %p323 = pneg %p193
      %p324 = pneg %p190
      %p325 = pneg %p214
      %p326 = pneg %p211
      %p327 = pneg %p240
      %p328 = pneg %p237
      %p329 = scmp.lt.s32.totalorder %s20, 1
      %s330 = scalar_select %p329, %s20, 1
      %s331 = smul.addr %s330, 8
      %s332 = scalar_lea.vmem %s9, %s331
      %p333 = scmp.lt.s32.totalorder %s20, 1
      %s334 = scalar_select %p333, %s20, 1
      %s335 = smul.addr %s334, 8
      %s336 = scalar_lea.vmem %s0, %s335
      %p337 = scmp.lt.s32.totalorder %s20, 1
      %s338 = scalar_select %p337, %s20, 1
      %s339 = smul.addr %s338, 8
      %s340 = scalar_lea.vmem %s1, %s339
      %p341 = scmp.lt.s32.totalorder %s20, 1
      %s342 = scalar_select %p341, %s20, 1
      %s343 = smul.addr %s342, 8
      %s344 = scalar_lea.vmem %s9, %s343
      %v346 = vlaneseq
      %v347 = vand.u32 %v346, 127
      %vm348 = vcmp.lt.s32.totalorder %v347, 50
      %v349 = vld [vmem:[%s336] sm:$0xff]
      %v350 = vlaneseq
      %v351 = vshrl.u32 %v350, 7
      %v352 = vsub.s32 0, %v351
      %v353 = vrot.slane %v349, %v352
      %355 = vbcast.lane.b32.xlu0 %v353, 256
      %v356 = vpop.permute.xlu0 %355
      %s358 = sor.u32 256, 8
      %359 = vbcast.lane.b32.xlu0 %v353, %s358
      %v360 = vpop.permute.xlu0 %359
      %v361 = vlaneseq
      %v362 = vshrl.u32 %v361, 7
      %v363 = vsub.s32 1, %v362
      %v364 = vrot.slane %v349, %v363
      %366 = vbcast.lane.b32.xlu0 %v364, 256
      %v367 = vpop.permute.xlu0 %366
      %s369 = sor.u32 256, 8
      %370 = vbcast.lane.b32.xlu0 %v364, %s369
      %v371 = vpop.permute.xlu0 %370
      %v372 = vlaneseq
      %v373 = vshrl.u32 %v372, 7
      %v374 = vsub.s32 2, %v373
      %v375 = vrot.slane %v349, %v374
      %377 = vbcast.lane.b32.xlu0 %v375, 256
      %v378 = vpop.permute.xlu0 %377
      %s380 = sor.u32 256, 8
      %381 = vbcast.lane.b32.xlu0 %v375, %s380
      %v382 = vpop.permute.xlu0 %381
      %v383 = vlaneseq
      %v384 = vshrl.u32 %v383, 7
      %v385 = vsub.s32 3, %v384
      %v386 = vrot.slane %v349, %v385
      %388 = vbcast.lane.b32.xlu0 %v386, 256
      %v389 = vpop.permute.xlu0 %388
      %s391 = sor.u32 256, 8
      %392 = vbcast.lane.b32.xlu0 %v386, %s391
      %v393 = vpop.permute.xlu0 %392
      %v394 = vlaneseq
      %v395 = vshrl.u32 %v394, 7
      %v396 = vsub.s32 4, %v395
      %v397 = vrot.slane %v349, %v396
      %399 = vbcast.lane.b32.xlu0 %v397, 256
      %v400 = vpop.permute.xlu0 %399
      %s402 = sor.u32 256, 8
      %403 = vbcast.lane.b32.xlu0 %v397, %s402
      %v404 = vpop.permute.xlu0 %403
      %v405 = vlaneseq
      %v406 = vshrl.u32 %v405, 7
      %v407 = vsub.s32 5, %v406
      %v408 = vrot.slane %v349, %v407
      %410 = vbcast.lane.b32.xlu0 %v408, 256
      %v411 = vpop.permute.xlu0 %410
      %s413 = sor.u32 256, 8
      %414 = vbcast.lane.b32.xlu0 %v408, %s413
      %v415 = vpop.permute.xlu0 %414
      %v416 = vlaneseq
      %v417 = vshrl.u32 %v416, 7
      %v418 = vsub.s32 6, %v417
      %v419 = vrot.slane %v349, %v418
      %421 = vbcast.lane.b32.xlu0 %v419, 256
      %v422 = vpop.permute.xlu0 %421
      %s424 = sor.u32 256, 8
      %425 = vbcast.lane.b32.xlu0 %v419, %s424
      %v426 = vpop.permute.xlu0 %425
      %v427 = vlaneseq
      %v428 = vshrl.u32 %v427, 7
      %v429 = vsub.s32 7, %v428
      %v430 = vrot.slane %v349, %v429
      %432 = vbcast.lane.b32.xlu0 %v430, 256
      %v433 = vpop.permute.xlu0 %432
      %s435 = sor.u32 256, 8
      %436 = vbcast.lane.b32.xlu0 %v430, %s435
      %v437 = vpop.permute.xlu0 %436
      %v438 = vld [vmem:[%s340] sm:$0xff]
      %v439 = vlaneseq
      %v440 = vshrl.u32 %v439, 7
      %v441 = vsub.s32 0, %v440
      %v442 = vrot.slane %v438, %v441
      %444 = vbcast.lane.b32.xlu0 %v442, 256
      %v445 = vpop.permute.xlu0 %444
      %s447 = sor.u32 256, 8
      %448 = vbcast.lane.b32.xlu0 %v442, %s447
      %v449 = vpop.permute.xlu0 %448
      %v450 = vlaneseq
      %v451 = vshrl.u32 %v450, 7
      %v452 = vsub.s32 1, %v451
      %v453 = vrot.slane %v438, %v452
      %455 = vbcast.lane.b32.xlu0 %v453, 256
      %v456 = vpop.permute.xlu0 %455
      %s458 = sor.u32 256, 8
      %459 = vbcast.lane.b32.xlu0 %v453, %s458
      %v460 = vpop.permute.xlu0 %459
      %v461 = vlaneseq
      %v462 = vshrl.u32 %v461, 7
      %v463 = vsub.s32 2, %v462
      %v464 = vrot.slane %v438, %v463
      %466 = vbcast.lane.b32.xlu0 %v464, 256
      %v467 = vpop.permute.xlu0 %466
      %s469 = sor.u32 256, 8
      %470 = vbcast.lane.b32.xlu0 %v464, %s469
      %v471 = vpop.permute.xlu0 %470
      %v472 = vlaneseq
      %v473 = vshrl.u32 %v472, 7
      %v474 = vsub.s32 3, %v473
      %v475 = vrot.slane %v438, %v474
      %477 = vbcast.lane.b32.xlu0 %v475, 256
      %v478 = vpop.permute.xlu0 %477
      %s480 = sor.u32 256, 8
      %481 = vbcast.lane.b32.xlu0 %v475, %s480
      %v482 = vpop.permute.xlu0 %481
      %v483 = vlaneseq
      %v484 = vshrl.u32 %v483, 7
      %v485 = vsub.s32 4, %v484
      %v486 = vrot.slane %v438, %v485
      %488 = vbcast.lane.b32.xlu0 %v486, 256
      %v489 = vpop.permute.xlu0 %488
      %s491 = sor.u32 256, 8
      %492 = vbcast.lane.b32.xlu0 %v486, %s491
      %v493 = vpop.permute.xlu0 %492
      %v494 = vlaneseq
      %v495 = vshrl.u32 %v494, 7
      %v496 = vsub.s32 5, %v495
      %v497 = vrot.slane %v438, %v496
      %499 = vbcast.lane.b32.xlu0 %v497, 256
      %v500 = vpop.permute.xlu0 %499
      %s502 = sor.u32 256, 8
      %503 = vbcast.lane.b32.xlu0 %v497, %s502
      %v504 = vpop.permute.xlu0 %503
      %v505 = vlaneseq
      %v506 = vshrl.u32 %v505, 7
      %v507 = vsub.s32 6, %v506
      %v508 = vrot.slane %v438, %v507
      %510 = vbcast.lane.b32.xlu0 %v508, 256
      %v511 = vpop.permute.xlu0 %510
      %s513 = sor.u32 256, 8
      %514 = vbcast.lane.b32.xlu0 %v508, %s513
      %v515 = vpop.permute.xlu0 %514
      %v516 = vlaneseq
      %v517 = vshrl.u32 %v516, 7
      %v518 = vsub.s32 7, %v517
      %v519 = vrot.slane %v438, %v518
      %521 = vbcast.lane.b32.xlu0 %v519, 256
      %v522 = vpop.permute.xlu0 %521
      %s524 = sor.u32 256, 8
      %525 = vbcast.lane.b32.xlu0 %v519, %s524
      %v526 = vpop.permute.xlu0 %525
      %v527 = vadd.s32 %v445, 50
      %v528 = vadd.s32 %v449, 50
      %v529 = vadd.s32 %v456, 50
      %v530 = vadd.s32 %v460, 50
      %v531 = vadd.s32 %v467, 50
      %v532 = vadd.s32 %v471, 50
      %v533 = vadd.s32 %v478, 50
      %v534 = vadd.s32 %v482, 50
      %v535 = vadd.s32 %v489, 50
      %v536 = vadd.s32 %v493, 50
      %v537 = vadd.s32 %v500, 50
      %v538 = vadd.s32 %v504, 50
      %v539 = vadd.s32 %v511, 50
      %v540 = vadd.s32 %v515, 50
      %v541 = vadd.s32 %v522, 50
      %v542 = vadd.s32 %v526, 50
      %v543 = vsel %vm348, %v356, %v527
      %v544 = vsel %vm348, %v360, %v528
      %v545 = vsel %vm348, %v367, %v529
      %v546 = vsel %vm348, %v371, %v530
      %v547 = vsel %vm348, %v378, %v531
      %v548 = vsel %vm348, %v382, %v532
      %v549 = vsel %vm348, %v389, %v533
      %v550 = vsel %vm348, %v393, %v534
      %v551 = vsel %vm348, %v400, %v535
      %v552 = vsel %vm348, %v404, %v536
      %v553 = vsel %vm348, %v411, %v537
      %v554 = vsel %vm348, %v415, %v538
      %v555 = vsel %vm348, %v422, %v539
      %v556 = vsel %vm348, %v426, %v540
      %v557 = vsel %vm348, %v433, %v541
      %v558 = vsel %vm348, %v437, %v542
      %vm559 = vcmp.eq.s32.totalorder %v347, %v543
      %vm560 = vcmp.eq.s32.totalorder %v347, %v544
      %vm561 = vcmp.eq.s32.totalorder %v347, %v545
      %vm562 = vcmp.eq.s32.totalorder %v347, %v546
      %vm563 = vcmp.eq.s32.totalorder %v347, %v547
      %vm564 = vcmp.eq.s32.totalorder %v347, %v548
      %vm565 = vcmp.eq.s32.totalorder %v347, %v549
      %vm566 = vcmp.eq.s32.totalorder %v347, %v550
      %vm567 = vcmp.eq.s32.totalorder %v347, %v551
      %vm568 = vcmp.eq.s32.totalorder %v347, %v552
      %vm569 = vcmp.eq.s32.totalorder %v347, %v553
      %vm570 = vcmp.eq.s32.totalorder %v347, %v554
      %vm571 = vcmp.eq.s32.totalorder %v347, %v555
      %vm572 = vcmp.eq.s32.totalorder %v347, %v556
      %vm573 = vcmp.eq.s32.totalorder %v347, %v557
      %vm574 = vcmp.eq.s32.totalorder %v347, %v558
      %v575 = vsel %vm559, 1, 0
      %v576 = vsel %vm560, 1, 0
      %v577 = vsel %vm561, 1, 0
      %v578 = vsel %vm562, 1, 0
      %v579 = vsel %vm563, 1, 0
      %v580 = vsel %vm564, 1, 0
      %v581 = vsel %vm565, 1, 0
      %v582 = vsel %vm566, 1, 0
      %v583 = vsel %vm567, 1, 0
      %v584 = vsel %vm568, 1, 0
      %v585 = vsel %vm569, 1, 0
      %v586 = vsel %vm570, 1, 0
      %v587 = vsel %vm571, 1, 0
      %v588 = vsel %vm572, 1, 0
      %v589 = vsel %vm573, 1, 0
      %v590 = vsel %vm574, 1, 0
      %v591 = vcvt.s32.f32 %v575
      %v592 = vcvt.s32.f32 %v576
      %v593 = vcvt.s32.f32 %v577
      %v594 = vcvt.s32.f32 %v578
      %v595 = vcvt.s32.f32 %v579
      %v596 = vcvt.s32.f32 %v580
      %v597 = vcvt.s32.f32 %v581
      %v598 = vcvt.s32.f32 %v582
      %v599 = vcvt.s32.f32 %v583
      %v600 = vcvt.s32.f32 %v584
      %v601 = vcvt.s32.f32 %v585
      %v602 = vcvt.s32.f32 %v586
      %v603 = vcvt.s32.f32 %v587
      %v604 = vcvt.s32.f32 %v588
      %v605 = vcvt.s32.f32 %v589
      %v606 = vcvt.s32.f32 %v590
      %v607 = vld [vmem:[%s2] sm:$0xff]
      %v608 = vld [vmem:[%s2 + $0x8] sm:$0xff]
      %v609 = vld [vmem:[%s2 + $0x10] sm:$0xff]
      %v610 = vld [vmem:[%s2 + $0x18] sm:$0xff]
      %v611 = vld [vmem:[%s2 + $0x20] sm:$0xff]
      %v612 = vld [vmem:[%s2 + $0x28] sm:$0xff]
      %v613 = vld [vmem:[%s2 + $0x30] sm:$0xff]
      %v614 = vld [vmem:[%s2 + $0x38] sm:$0xff]
      %v615 = vld [vmem:[%s2 + $0x40] sm:$0xff]
      %v616 = vld [vmem:[%s2 + $0x48] sm:$0xff]
      %v617 = vld [vmem:[%s2 + $0x50] sm:$0xff]
      %v618 = vld [vmem:[%s2 + $0x58] sm:$0xff]
      %v619 = vld [vmem:[%s2 + $0x60] sm:$0xff]
      %v620 = vld [vmem:[%s2 + $0x68] sm:$0xff]
      %v621 = vld [vmem:[%s2 + $0x70] sm:$0xff]
      %v622 = vld [vmem:[%s2 + $0x78] sm:$0xff]
      %v623 = vld [vmem:[%s2 + $0x80] sm:$0x3f]
      %v624 = vld [vmem:[%s2 + $0x88] sm:$0x3f]
      %vm625 = vcmask 572416
      %v627 = vsel %vm625, %v591, 0
      %v630 = vsel %vm625, %v592, 0
      %v633 = vsel %vm625, %v593, 0
      %v636 = vsel %vm625, %v594, 0
      %v639 = vsel %vm625, %v595, 0
      %v642 = vsel %vm625, %v596, 0
      %v645 = vsel %vm625, %v597, 0
      %v648 = vsel %vm625, %v598, 0
      %v651 = vsel %vm625, %v599, 0
      %v654 = vsel %vm625, %v600, 0
      %v657 = vsel %vm625, %v601, 0
      %v660 = vsel %vm625, %v602, 0
      %v663 = vsel %vm625, %v603, 0
      %v666 = vsel %vm625, %v604, 0
      %v669 = vsel %vm625, %v605, 0
      %v672 = vsel %vm625, %v606, 0
      %vm674 = vcmask 1045504
      %v676 = vsel %vm674, %v623, 0
      %v679 = vsel %vm674, %v624, 0
      %681 = vmatprep.subr.mxu0 0.0
      %682 = vmatpush1.msra.mxu0 0.0
      %683 = vmatprep.subr.mxu0 0.0
      %684 = vmatpush1.msra.mxu0 0.0
      %685 = vmatprep.subr.mxu0 0.0
      %686 = vmatpush1.msra.mxu0 0.0
      %687 = vmatprep.subr.mxu0 0.0
      %688 = vmatpush1.msra.mxu0 0.0
      %689 = vmatprep.subr.mxu0 0.0
      %690 = vmatpush1.msra.mxu0 0.0
      %691 = vmatprep.subr.mxu0 0.0
      %692 = vmatpush1.msra.mxu0 0.0
      %693 = vmatprep.subr.mxu0 0.0
      %694 = vmatpush1.msra.mxu0 0.0
      %695 = vmatprep.subr.mxu0 %v679
      %696 = vmatpush1.msra.mxu0 %v676
      %697 = vmatprep.subr.mxu0 %v622
      %698 = vmatpush1.msra.mxu0 %v621
      %699 = vmatprep.subr.mxu0 %v620
      %700 = vmatpush1.msra.mxu0 %v619
      %701 = vmatprep.subr.mxu0 %v618
      %702 = vmatpush1.msra.mxu0 %v617
      %703 = vmatprep.subr.mxu0 %v616
      %704 = vmatpush1.msra.mxu0 %v615
      %705 = vmatprep.subr.mxu0 %v614
      %706 = vmatpush1.msra.mxu0 %v613
      %707 = vmatprep.subr.mxu0 %v612
      %708 = vmatpush1.msra.mxu0 %v611
      %709 = vmatprep.subr.mxu0 %v610
      %710 = vmatpush1.msra.mxu0 %v609
      %711 = vmatprep.subr.mxu0 %v608
      %712 = vmatpush1.msra.mxu0 %v607
      %713 = vmatprep.subr.mxu0 0.0
      %714 = vmatpush2.msra.mxu0 0.0
      %715 = vmatprep.subr.mxu0 0.0
      %716 = vmatpush2.msra.mxu0 0.0
      %717 = vmatprep.subr.mxu0 0.0
      %718 = vmatpush2.msra.mxu0 0.0
      %719 = vmatprep.subr.mxu0 0.0
      %720 = vmatpush2.msra.mxu0 0.0
      %721 = vmatprep.subr.mxu0 0.0
      %722 = vmatpush2.msra.mxu0 0.0
      %723 = vmatprep.subr.mxu0 0.0
      %724 = vmatpush2.msra.mxu0 0.0
      %725 = vmatprep.subr.mxu0 0.0
      %726 = vmatpush2.msra.mxu0 0.0
      %727 = vmatprep.subr.mxu0 0.0
      %728 = vmatpush2.msra.mxu0 0.0
      %729 = vmatprep.subr.mxu0 0.0
      %730 = vmatpush2.msra.mxu0 0.0
      %731 = vmatprep.subr.mxu0 0.0
      %732 = vmatpush2.msra.mxu0 0.0
      %733 = vmatprep.subr.mxu0 0.0
      %734 = vmatpush2.msra.mxu0 0.0
      %735 = vmatprep.subr.mxu0 0.0
      %736 = vmatpush2.msra.mxu0 0.0
      %737 = vmatprep.subr.mxu0 0.0
      %738 = vmatpush2.msra.mxu0 0.0
      %739 = vmatprep.subr.mxu0 0.0
      %740 = vmatpush2.msra.mxu0 0.0
      %741 = vmatprep.subr.mxu0 0.0
      %742 = vmatpush2.msra.mxu0 0.0
      %743 = vmatprep.subr.mxu0 0.0
      %744 = vmatpush2.msra.mxu0 0.0
      %745 = vmatprep.mubr.f32.mxu0 0.0
      %746 = vmatmul.mubr.f32.gmra.mxu0 %v627
      %v747 = vpop.f32.mrf.mxu0
      %v748 = vadd.f32 0.0, %v747
      %v749 = vpop.f32.mrf.mxu0
      %v750 = vadd.f32 0.0, %v749
      %751 = vmatprep.mubr.f32.mxu0 0.0
      %752 = vmatmul.mubr.f32.gmra.mxu0 %v630
      %v753 = vpop.f32.mrf.mxu0
      %v754 = vadd.f32 0.0, %v753
      %v755 = vpop.f32.mrf.mxu0
      %v756 = vadd.f32 0.0, %v755
      %757 = vmatprep.mubr.f32.mxu0 0.0
      %758 = vmatmul.mubr.f32.gmra.mxu0 %v633
      %v759 = vpop.f32.mrf.mxu0
      %v760 = vadd.f32 0.0, %v759
      %v761 = vpop.f32.mrf.mxu0
      %v762 = vadd.f32 0.0, %v761
      %763 = vmatprep.mubr.f32.mxu0 0.0
      %764 = vmatmul.mubr.f32.gmra.mxu0 %v636
      %v765 = vpop.f32.mrf.mxu0
      %v766 = vadd.f32 0.0, %v765
      %v767 = vpop.f32.mrf.mxu0
      %v768 = vadd.f32 0.0, %v767
      %769 = vmatprep.mubr.f32.mxu0 0.0
      %770 = vmatmul.mubr.f32.gmra.mxu0 %v639
      %v771 = vpop.f32.mrf.mxu0
      %v772 = vadd.f32 0.0, %v771
      %v773 = vpop.f32.mrf.mxu0
      %v774 = vadd.f32 0.0, %v773
      %775 = vmatprep.mubr.f32.mxu0 0.0
      %776 = vmatmul.mubr.f32.gmra.mxu0 %v642
      %v777 = vpop.f32.mrf.mxu0
      %v778 = vadd.f32 0.0, %v777
      %v779 = vpop.f32.mrf.mxu0
      %v780 = vadd.f32 0.0, %v779
      %781 = vmatprep.mubr.f32.mxu0 0.0
      %782 = vmatmul.mubr.f32.gmra.mxu0 %v645
      %v783 = vpop.f32.mrf.mxu0
      %v784 = vadd.f32 0.0, %v783
      %v785 = vpop.f32.mrf.mxu0
      %v786 = vadd.f32 0.0, %v785
      %787 = vmatprep.mubr.f32.mxu0 0.0
      %788 = vmatmul.mubr.f32.gmra.mxu0 %v648
      %v789 = vpop.f32.mrf.mxu0
      %v790 = vadd.f32 0.0, %v789
      %v791 = vpop.f32.mrf.mxu0
      %v792 = vadd.f32 0.0, %v791
      %793 = vmatprep.mubr.f32.mxu0 0.0
      %794 = vmatmul.mubr.f32.gmra.mxu0 %v651
      %v795 = vpop.f32.mrf.mxu0
      %v796 = vadd.f32 0.0, %v795
      %v797 = vpop.f32.mrf.mxu0
      %v798 = vadd.f32 0.0, %v797
      %799 = vmatprep.mubr.f32.mxu0 0.0
      %800 = vmatmul.mubr.f32.gmra.mxu0 %v654
      %v801 = vpop.f32.mrf.mxu0
      %v802 = vadd.f32 0.0, %v801
      %v803 = vpop.f32.mrf.mxu0
      %v804 = vadd.f32 0.0, %v803
      %805 = vmatprep.mubr.f32.mxu0 0.0
      %806 = vmatmul.mubr.f32.gmra.mxu0 %v657
      %v807 = vpop.f32.mrf.mxu0
      %v808 = vadd.f32 0.0, %v807
      %v809 = vpop.f32.mrf.mxu0
      %v810 = vadd.f32 0.0, %v809
      %811 = vmatprep.mubr.f32.mxu0 0.0
      %812 = vmatmul.mubr.f32.gmra.mxu0 %v660
      %v813 = vpop.f32.mrf.mxu0
      %v814 = vadd.f32 0.0, %v813
      %v815 = vpop.f32.mrf.mxu0
      %v816 = vadd.f32 0.0, %v815
      %817 = vmatprep.mubr.f32.mxu0 0.0
      %818 = vmatmul.mubr.f32.gmra.mxu0 %v663
      %v819 = vpop.f32.mrf.mxu0
      %v820 = vadd.f32 0.0, %v819
      %v821 = vpop.f32.mrf.mxu0
      %v822 = vadd.f32 0.0, %v821
      %823 = vmatprep.mubr.f32.mxu0 0.0
      %824 = vmatmul.mubr.f32.gmra.mxu0 %v666
      %v825 = vpop.f32.mrf.mxu0
      %v826 = vadd.f32 0.0, %v825
      %v827 = vpop.f32.mrf.mxu0
      %v828 = vadd.f32 0.0, %v827
      %829 = vmatprep.mubr.f32.mxu0 0.0
      %830 = vmatmul.mubr.f32.gmra.mxu0 %v669
      %v831 = vpop.f32.mrf.mxu0
      %v832 = vadd.f32 0.0, %v831
      %v833 = vpop.f32.mrf.mxu0
      %v834 = vadd.f32 0.0, %v833
      %835 = vmatprep.mubr.f32.mxu0 0.0
      %836 = vmatmul.mubr.f32.gmra.mxu0 %v672
      %v837 = vpop.f32.mrf.mxu0
      %v838 = vadd.f32 0.0, %v837
      %v839 = vpop.f32.mrf.mxu0
      %v840 = vadd.f32 0.0, %v839
      %841 = vdwg.mxu0
      %858 = vrot.lane.b32.xlu0 %v748, 96
      %v859 = vpop.permute.xlu0 %858
      %860 = vrot.lane.b32.xlu0 %v754, 96
      %v861 = vpop.permute.xlu0 %860
      %862 = vrot.lane.b32.xlu0 %v760, 96
      %v863 = vpop.permute.xlu0 %862
      %864 = vrot.lane.b32.xlu0 %v766, 96
      %v865 = vpop.permute.xlu0 %864
      %866 = vrot.lane.b32.xlu0 %v772, 96
      %v867 = vpop.permute.xlu0 %866
      %868 = vrot.lane.b32.xlu0 %v778, 96
      %v869 = vpop.permute.xlu0 %868
      %870 = vrot.lane.b32.xlu0 %v784, 96
      %v871 = vpop.permute.xlu0 %870
      %872 = vrot.lane.b32.xlu0 %v790, 96
      %v873 = vpop.permute.xlu0 %872
      %874 = vrot.lane.b32.xlu0 %v796, 96
      %v875 = vpop.permute.xlu0 %874
      %876 = vrot.lane.b32.xlu0 %v802, 96
      %v877 = vpop.permute.xlu0 %876
      %878 = vrot.lane.b32.xlu0 %v808, 96
      %v879 = vpop.permute.xlu0 %878
      %880 = vrot.lane.b32.xlu0 %v814, 96
      %v881 = vpop.permute.xlu0 %880
      %882 = vrot.lane.b32.xlu0 %v820, 96
      %v883 = vpop.permute.xlu0 %882
      %884 = vrot.lane.b32.xlu0 %v826, 96
      %v885 = vpop.permute.xlu0 %884
      %886 = vrot.lane.b32.xlu0 %v832, 96
      %v887 = vpop.permute.xlu0 %886
      %888 = vrot.lane.b32.xlu0 %v838, 96
      %v889 = vpop.permute.xlu0 %888
      %v906 = vrot.slane %v859, 1
      %v907 = vrot.slane %v861, 1
      %v908 = vrot.slane %v863, 1
      %v909 = vrot.slane %v865, 1
      %v910 = vrot.slane %v867, 1
      %v911 = vrot.slane %v869, 1
      %v912 = vrot.slane %v871, 1
      %v913 = vrot.slane %v873, 1
      %v914 = vrot.slane %v875, 1
      %v915 = vrot.slane %v877, 1
      %v916 = vrot.slane %v879, 1
      %v917 = vrot.slane %v881, 1
      %v918 = vrot.slane %v883, 1
      %v919 = vrot.slane %v885, 1
      %v920 = vrot.slane %v887, 1
      %v921 = vrot.slane %v889, 1
      %v922 = vlaneseq
      %v923 = vshrl.u32 %v922, 7
      %vm924 = vcmp.lt.s32.totalorder %v923, 7
      %v925 = vsel %vm924, %v920, %v921
      %v926 = vsel %vm924, %v919, %v920
      %v927 = vsel %vm924, %v918, %v919
      %v928 = vsel %vm924, %v917, %v918
      %v929 = vsel %vm924, %v916, %v917
      %v930 = vsel %vm924, %v915, %v916
      %v931 = vsel %vm924, %v914, %v915
      %v932 = vsel %vm924, %v913, %v914
      %v933 = vsel %vm924, %v912, %v913
      %v934 = vsel %vm924, %v911, %v912
      %v935 = vsel %vm924, %v910, %v911
      %v936 = vsel %vm924, %v909, %v910
      %v937 = vsel %vm924, %v908, %v909
      %v938 = vsel %vm924, %v907, %v908
      %v939 = vsel %vm924, %v906, %v907
      %v940 = vsel %vm924, %v921, %v906
      %v941 = vadd.f32 %v748, %v939
      %v942 = vadd.f32 %v754, %v938
      %v943 = vadd.f32 %v760, %v937
      %v944 = vadd.f32 %v766, %v936
      %v945 = vadd.f32 %v772, %v935
      %v946 = vadd.f32 %v778, %v934
      %v947 = vadd.f32 %v784, %v933
      %v948 = vadd.f32 %v790, %v932
      %v949 = vadd.f32 %v796, %v931
      %v950 = vadd.f32 %v802, %v930
      %v951 = vadd.f32 %v808, %v929
      %v952 = vadd.f32 %v814, %v928
      %v953 = vadd.f32 %v820, %v927
      %v954 = vadd.f32 %v826, %v926
      %v955 = vadd.f32 %v832, %v925
      %v956 = vadd.f32 %v838, %v940
      %957 = vrot.lane.b32.xlu0 %v748, 64
      %v958 = vpop.permute.xlu0 %957
      %959 = vrot.lane.b32.xlu0 %v754, 64
      %v960 = vpop.permute.xlu0 %959
      %961 = vrot.lane.b32.xlu0 %v760, 64
      %v962 = vpop.permute.xlu0 %961
      %963 = vrot.lane.b32.xlu0 %v766, 64
      %v964 = vpop.permute.xlu0 %963
      %965 = vrot.lane.b32.xlu0 %v772, 64
      %v966 = vpop.permute.xlu0 %965
      %967 = vrot.lane.b32.xlu0 %v778, 64
      %v968 = vpop.permute.xlu0 %967
      %969 = vrot.lane.b32.xlu0 %v784, 64
      %v970 = vpop.permute.xlu0 %969
      %971 = vrot.lane.b32.xlu0 %v790, 64
      %v972 = vpop.permute.xlu0 %971
      %973 = vrot.lane.b32.xlu0 %v796, 64
      %v974 = vpop.permute.xlu0 %973
      %975 = vrot.lane.b32.xlu0 %v802, 64
      %v976 = vpop.permute.xlu0 %975
      %977 = vrot.lane.b32.xlu0 %v808, 64
      %v978 = vpop.permute.xlu0 %977
      %979 = vrot.lane.b32.xlu0 %v814, 64
      %v980 = vpop.permute.xlu0 %979
      %981 = vrot.lane.b32.xlu0 %v820, 64
      %v982 = vpop.permute.xlu0 %981
      %983 = vrot.lane.b32.xlu0 %v826, 64
      %v984 = vpop.permute.xlu0 %983
      %985 = vrot.lane.b32.xlu0 %v832, 64
      %v986 = vpop.permute.xlu0 %985
      %987 = vrot.lane.b32.xlu0 %v838, 64
      %v988 = vpop.permute.xlu0 %987
      %v1005 = vrot.slane %v958, 2
      %v1006 = vrot.slane %v960, 2
      %v1007 = vrot.slane %v962, 2
      %v1008 = vrot.slane %v964, 2
      %v1009 = vrot.slane %v966, 2
      %v1010 = vrot.slane %v968, 2
      %v1011 = vrot.slane %v970, 2
      %v1012 = vrot.slane %v972, 2
      %v1013 = vrot.slane %v974, 2
      %v1014 = vrot.slane %v976, 2
      %v1015 = vrot.slane %v978, 2
      %v1016 = vrot.slane %v980, 2
      %v1017 = vrot.slane %v982, 2
      %v1018 = vrot.slane %v984, 2
      %v1019 = vrot.slane %v986, 2
      %v1020 = vrot.slane %v988, 2
      %vm1021 = vcmp.lt.s32.totalorder %v923, 6
      %v1022 = vsel %vm1021, %v1019, %v1020
      %v1023 = vsel %vm1021, %v1018, %v1019
      %v1024 = vsel %vm1021, %v1017, %v1018
      %v1025 = vsel %vm1021, %v1016, %v1017
      %v1026 = vsel %vm1021, %v1015, %v1016
      %v1027 = vsel %vm1021, %v1014, %v1015
      %v1028 = vsel %vm1021, %v1013, %v1014
      %v1029 = vsel %vm1021, %v1012, %v1013
      %v1030 = vsel %vm1021, %v1011, %v1012
      %v1031 = vsel %vm1021, %v1010, %v1011
      %v1032 = vsel %vm1021, %v1009, %v1010
      %v1033 = vsel %vm1021, %v1008, %v1009
      %v1034 = vsel %vm1021, %v1007, %v1008
      %v1035 = vsel %vm1021, %v1006, %v1007
      %v1036 = vsel %vm1021, %v1005, %v1006
      %v1037 = vsel %vm1021, %v1020, %v1005
      %v1038 = vadd.f32 %v941, %v1036
      %v1039 = vadd.f32 %v942, %v1035
      %v1040 = vadd.f32 %v943, %v1034
      %v1041 = vadd.f32 %v944, %v1033
      %v1042 = vadd.f32 %v945, %v1032
      %v1043 = vadd.f32 %v946, %v1031
      %v1044 = vadd.f32 %v947, %v1030
      %v1045 = vadd.f32 %v948, %v1029
      %v1046 = vadd.f32 %v949, %v1028
      %v1047 = vadd.f32 %v950, %v1027
      %v1048 = vadd.f32 %v951, %v1026
      %v1049 = vadd.f32 %v952, %v1025
      %v1050 = vadd.f32 %v953, %v1024
      %v1051 = vadd.f32 %v954, %v1023
      %v1052 = vadd.f32 %v955, %v1022
      %v1053 = vadd.f32 %v956, %v1037
      %1054 = vrot.lane.b32.xlu0 %v748, 32
      %v1055 = vpop.permute.xlu0 %1054
      %1056 = vrot.lane.b32.xlu0 %v754, 32
      %v1057 = vpop.permute.xlu0 %1056
      %1058 = vrot.lane.b32.xlu0 %v760, 32
      %v1059 = vpop.permute.xlu0 %1058
      %1060 = vrot.lane.b32.xlu0 %v766, 32
      %v1061 = vpop.permute.xlu0 %1060
      %1062 = vrot.lane.b32.xlu0 %v772, 32
      %v1063 = vpop.permute.xlu0 %1062
      %1064 = vrot.lane.b32.xlu0 %v778, 32
      %v1065 = vpop.permute.xlu0 %1064
      %1066 = vrot.lane.b32.xlu0 %v784, 32
      %v1067 = vpop.permute.xlu0 %1066
      %1068 = vrot.lane.b32.xlu0 %v790, 32
      %v1069 = vpop.permute.xlu0 %1068
      %1070 = vrot.lane.b32.xlu0 %v796, 32
      %v1071 = vpop.permute.xlu0 %1070
      %1072 = vrot.lane.b32.xlu0 %v802, 32
      %v1073 = vpop.permute.xlu0 %1072
      %1074 = vrot.lane.b32.xlu0 %v808, 32
      %v1075 = vpop.permute.xlu0 %1074
      %1076 = vrot.lane.b32.xlu0 %v814, 32
      %v1077 = vpop.permute.xlu0 %1076
      %1078 = vrot.lane.b32.xlu0 %v820, 32
      %v1079 = vpop.permute.xlu0 %1078
      %1080 = vrot.lane.b32.xlu0 %v826, 32
      %v1081 = vpop.permute.xlu0 %1080
      %1082 = vrot.lane.b32.xlu0 %v832, 32
      %v1083 = vpop.permute.xlu0 %1082
      %1084 = vrot.lane.b32.xlu0 %v838, 32
      %v1085 = vpop.permute.xlu0 %1084
      %v1102 = vrot.slane %v1055, 3
      %v1103 = vrot.slane %v1057, 3
      %v1104 = vrot.slane %v1059, 3
      %v1105 = vrot.slane %v1061, 3
      %v1106 = vrot.slane %v1063, 3
      %v1107 = vrot.slane %v1065, 3
      %v1108 = vrot.slane %v1067, 3
      %v1109 = vrot.slane %v1069, 3
      %v1110 = vrot.slane %v1071, 3
      %v1111 = vrot.slane %v1073, 3
      %v1112 = vrot.slane %v1075, 3
      %v1113 = vrot.slane %v1077, 3
      %v1114 = vrot.slane %v1079, 3
      %v1115 = vrot.slane %v1081, 3
      %v1116 = vrot.slane %v1083, 3
      %v1117 = vrot.slane %v1085, 3
      %vm1118 = vcmp.lt.s32.totalorder %v923, 5
      %v1119 = vsel %vm1118, %v1116, %v1117
      %v1120 = vsel %vm1118, %v1115, %v1116
      %v1121 = vsel %vm1118, %v1114, %v1115
      %v1122 = vsel %vm1118, %v1113, %v1114
      %v1123 = vsel %vm1118, %v1112, %v1113
      %v1124 = vsel %vm1118, %v1111, %v1112
      %v1125 = vsel %vm1118, %v1110, %v1111
      %v1126 = vsel %vm1118, %v1109, %v1110
      %v1127 = vsel %vm1118, %v1108, %v1109
      %v1128 = vsel %vm1118, %v1107, %v1108
      %v1129 = vsel %vm1118, %v1106, %v1107
      %v1130 = vsel %vm1118, %v1105, %v1106
      %v1131 = vsel %vm1118, %v1104, %v1105
      %v1132 = vsel %vm1118, %v1103, %v1104
      %v1133 = vsel %vm1118, %v1102, %v1103
      %v1134 = vsel %vm1118, %v1117, %v1102
      %v1135 = vadd.f32 %v1038, %v1133
      %v1136 = vadd.f32 %v1039, %v1132
      %v1137 = vadd.f32 %v1040, %v1131
      %v1138 = vadd.f32 %v1041, %v1130
      %v1139 = vadd.f32 %v1042, %v1129
      %v1140 = vadd.f32 %v1043, %v1128
      %v1141 = vadd.f32 %v1044, %v1127
      %v1142 = vadd.f32 %v1045, %v1126
      %v1143 = vadd.f32 %v1046, %v1125
      %v1144 = vadd.f32 %v1047, %v1124
      %v1145 = vadd.f32 %v1048, %v1123
      %v1146 = vadd.f32 %v1049, %v1122
      %v1147 = vadd.f32 %v1050, %v1121
      %v1148 = vadd.f32 %v1051, %v1120
      %v1149 = vadd.f32 %v1052, %v1119
      %v1150 = vadd.f32 %v1053, %v1134
      %v1151 = vrot.slane %v750, 4
      %v1152 = vrot.slane %v756, 4
      %v1153 = vrot.slane %v762, 4
      %v1154 = vrot.slane %v768, 4
      %v1155 = vrot.slane %v774, 4
      %v1156 = vrot.slane %v780, 4
      %v1157 = vrot.slane %v786, 4
      %v1158 = vrot.slane %v792, 4
      %v1159 = vrot.slane %v798, 4
      %v1160 = vrot.slane %v804, 4
      %v1161 = vrot.slane %v810, 4
      %v1162 = vrot.slane %v816, 4
      %v1163 = vrot.slane %v822, 4
      %v1164 = vrot.slane %v828, 4
      %v1165 = vrot.slane %v834, 4
      %v1166 = vrot.slane %v840, 4
      %vm1167 = vcmp.lt.s32.totalorder %v923, 4
      %v1168 = vsel %vm1167, %v1165, %v1166
      %v1169 = vsel %vm1167, %v1164, %v1165
      %v1170 = vsel %vm1167, %v1163, %v1164
      %v1171 = vsel %vm1167, %v1162, %v1163
      %v1172 = vsel %vm1167, %v1161, %v1162
      %v1173 = vsel %vm1167, %v1160, %v1161
      %v1174 = vsel %vm1167, %v1159, %v1160
      %v1175 = vsel %vm1167, %v1158, %v1159
      %v1176 = vsel %vm1167, %v1157, %v1158
      %v1177 = vsel %vm1167, %v1156, %v1157
      %v1178 = vsel %vm1167, %v1155, %v1156
      %v1179 = vsel %vm1167, %v1154, %v1155
      %v1180 = vsel %vm1167, %v1153, %v1154
      %v1181 = vsel %vm1167, %v1152, %v1153
      %v1182 = vsel %vm1167, %v1151, %v1152
      %v1183 = vsel %vm1167, %v1166, %v1151
      %v1184 = vadd.f32 %v1135, %v1182
      %v1185 = vadd.f32 %v1136, %v1181
      %v1186 = vadd.f32 %v1137, %v1180
      %v1187 = vadd.f32 %v1138, %v1179
      %v1188 = vadd.f32 %v1139, %v1178
      %v1189 = vadd.f32 %v1140, %v1177
      %v1190 = vadd.f32 %v1141, %v1176
      %v1191 = vadd.f32 %v1142, %v1175
      %v1192 = vadd.f32 %v1143, %v1174
      %v1193 = vadd.f32 %v1144, %v1173
      %v1194 = vadd.f32 %v1145, %v1172
      %v1195 = vadd.f32 %v1146, %v1171
      %v1196 = vadd.f32 %v1147, %v1170
      %v1197 = vadd.f32 %v1148, %v1169
      %v1198 = vadd.f32 %v1149, %v1168
      %v1199 = vadd.f32 %v1150, %v1183
      %v1200 = vld [vmem:[%s3] sm:$0x1]
      %v1202 = vlaneseq
      %v1203 = vshrl.u32 %v1202, 7
      %v1204 = vsub.s32 0, %v1203
      %v1205 = vrot.slane %v1200, %v1204
      %v1207 = vadd.f32 %v1184, %v1205
      %v1208 = vadd.f32 %v1185, %v1205
      %v1209 = vadd.f32 %v1186, %v1205
      %v1210 = vadd.f32 %v1187, %v1205
      %v1211 = vadd.f32 %v1188, %v1205
      %v1212 = vadd.f32 %v1189, %v1205
      %v1213 = vadd.f32 %v1190, %v1205
      %v1214 = vadd.f32 %v1191, %v1205
      %v1215 = vadd.f32 %v1192, %v1205
      %v1216 = vadd.f32 %v1193, %v1205
      %v1217 = vadd.f32 %v1194, %v1205
      %v1218 = vadd.f32 %v1195, %v1205
      %v1219 = vadd.f32 %v1196, %v1205
      %v1220 = vadd.f32 %v1197, %v1205
      %v1221 = vadd.f32 %v1198, %v1205
      %v1222 = vadd.f32 %v1199, %v1205
      %v1223 = vmax.f32 %v1207, 0.0
      %v1224 = vmax.f32 %v1208, 0.0
      %v1225 = vmax.f32 %v1209, 0.0
      %v1226 = vmax.f32 %v1210, 0.0
      %v1227 = vmax.f32 %v1211, 0.0
      %v1228 = vmax.f32 %v1212, 0.0
      %v1229 = vmax.f32 %v1213, 0.0
      %v1230 = vmax.f32 %v1214, 0.0
      %v1231 = vmax.f32 %v1215, 0.0
      %v1232 = vmax.f32 %v1216, 0.0
      %v1233 = vmax.f32 %v1217, 0.0
      %v1234 = vmax.f32 %v1218, 0.0
      %v1235 = vmax.f32 %v1219, 0.0
      %v1236 = vmax.f32 %v1220, 0.0
      %v1237 = vmax.f32 %v1221, 0.0
      %v1238 = vmax.f32 %v1222, 0.0
      %v1239 = vld [vmem:[%s4] sm:$0xff]
      %v1240 = vld [vmem:[%s4 + $0x8] sm:$0xff]
      %v1241 = vmul.f32 %v1223, %v1239
      %v1242 = vmul.f32 %v1224, %v1240
      %v1243 = vmul.f32 %v1225, %v1239
      %v1244 = vmul.f32 %v1226, %v1240
      %v1245 = vmul.f32 %v1227, %v1239
      %v1246 = vmul.f32 %v1228, %v1240
      %v1247 = vmul.f32 %v1229, %v1239
      %v1248 = vmul.f32 %v1230, %v1240
      %v1249 = vmul.f32 %v1231, %v1239
      %v1250 = vmul.f32 %v1232, %v1240
      %v1251 = vmul.f32 %v1233, %v1239
      %v1252 = vmul.f32 %v1234, %v1240
      %v1253 = vmul.f32 %v1235, %v1239
      %v1254 = vmul.f32 %v1236, %v1240
      %v1255 = vmul.f32 %v1237, %v1239
      %v1256 = vmul.f32 %v1238, %v1240
      %vm1257 = vcmask 261120
      %v1258 = vsel %vm1257, %v1241, -inf
      %v1259 = vsel %vm1257, %v1242, -inf
      %v1260 = vmax.f32 %v1258, %v1259
      %v1261 = vrot.slane %v1260, 4
      %v1262 = vmax.f32 %v1260, %v1261
      %v1263 = vrot.slane %v1262, 2
      %v1264 = vmax.f32 %v1262, %v1263
      %v1265 = vrot.slane %v1264, 1
      %v1266 = vmax.f32 %v1264, %v1265
      %v1267 = vsel %vm1257, %v1243, -inf
      %v1268 = vsel %vm1257, %v1244, -inf
      %v1269 = vmax.f32 %v1267, %v1268
      %v1270 = vrot.slane %v1269, 4
      %v1271 = vmax.f32 %v1269, %v1270
      %v1272 = vrot.slane %v1271, 2
      %v1273 = vmax.f32 %v1271, %v1272
      %v1274 = vrot.slane %v1273, 1
      %v1275 = vmax.f32 %v1273, %v1274
      %v1276 = vsel %vm1257, %v1245, -inf
      %v1277 = vsel %vm1257, %v1246, -inf
      %v1278 = vmax.f32 %v1276, %v1277
      %v1279 = vrot.slane %v1278, 4
      %v1280 = vmax.f32 %v1278, %v1279
      %v1281 = vrot.slane %v1280, 2
      %v1282 = vmax.f32 %v1280, %v1281
      %v1283 = vrot.slane %v1282, 1
      %v1284 = vmax.f32 %v1282, %v1283
      %v1285 = vsel %vm1257, %v1247, -inf
      %v1286 = vsel %vm1257, %v1248, -inf
      %v1287 = vmax.f32 %v1285, %v1286
      %v1288 = vrot.slane %v1287, 4
      %v1289 = vmax.f32 %v1287, %v1288
      %v1290 = vrot.slane %v1289, 2
      %v1291 = vmax.f32 %v1289, %v1290
      %v1292 = vrot.slane %v1291, 1
      %v1293 = vmax.f32 %v1291, %v1292
      %v1294 = vsel %vm1257, %v1249, -inf
      %v1295 = vsel %vm1257, %v1250, -inf
      %v1296 = vmax.f32 %v1294, %v1295
      %v1297 = vrot.slane %v1296, 4
      %v1298 = vmax.f32 %v1296, %v1297
      %v1299 = vrot.slane %v1298, 2
      %v1300 = vmax.f32 %v1298, %v1299
      %v1301 = vrot.slane %v1300, 1
      %v1302 = vmax.f32 %v1300, %v1301
      %v1303 = vsel %vm1257, %v1251, -inf
      %v1304 = vsel %vm1257, %v1252, -inf
      %v1305 = vmax.f32 %v1303, %v1304
      %v1306 = vrot.slane %v1305, 4
      %v1307 = vmax.f32 %v1305, %v1306
      %v1308 = vrot.slane %v1307, 2
      %v1309 = vmax.f32 %v1307, %v1308
      %v1310 = vrot.slane %v1309, 1
      %v1311 = vmax.f32 %v1309, %v1310
      %v1312 = vsel %vm1257, %v1253, -inf
      %v1313 = vsel %vm1257, %v1254, -inf
      %v1314 = vmax.f32 %v1312, %v1313
      %v1315 = vrot.slane %v1314, 4
      %v1316 = vmax.f32 %v1314, %v1315
      %v1317 = vrot.slane %v1316, 2
      %v1318 = vmax.f32 %v1316, %v1317
      %v1319 = vrot.slane %v1318, 1
      %v1320 = vmax.f32 %v1318, %v1319
      %v1321 = vsel %vm1257, %v1255, -inf
      %v1322 = vsel %vm1257, %v1256, -inf
      %v1323 = vmax.f32 %v1321, %v1322
      %v1324 = vrot.slane %v1323, 4
      %v1325 = vmax.f32 %v1323, %v1324
      %v1326 = vrot.slane %v1325, 2
      %v1327 = vmax.f32 %v1325, %v1326
      %v1328 = vrot.slane %v1327, 1
      %v1329 = vmax.f32 %v1327, %v1328
      %v1330 = vpack.c.bf16 %v1266, %v1266
      %v1331 = vpack.c.bf16 %v1275, %v1275
      %v1332 = vpack.c.bf16 %v1284, %v1284
      %v1333 = vpack.c.bf16 %v1293, %v1293
      %v1334 = vpack.c.bf16 %v1302, %v1302
      %v1335 = vpack.c.bf16 %v1311, %v1311
      %v1336 = vpack.c.bf16 %v1320, %v1320
      %v1337 = vpack.c.bf16 %v1329, %v1329
      %v1338 = vld [vmem:[%s5] sm:$0xff]
      %v1339 = vld [vmem:[%s5 + $0x8] sm:$0xff]
      %v1340 = vld [vmem:[%s5 + $0x10] sm:$0xff]
      %v1341 = vld [vmem:[%s5 + $0x18] sm:$0xff]
      %v1342 = vpack.c.bf16 %v1339, %v1338
      %v1343 = vpack.c.bf16 %v1341, %v1340
      %v1344 = vld [vmem:[%s6] sm:$0x1]
      %v1346 = vlaneseq
      %v1347 = vshrl.u32 %v1346, 7
      %v1348 = vsub.s32 0, %v1347
      %v1349 = vrot.slane %v1344, %v1348
      %v1359 = vunpack.c.l.b16 %v1330
      %v1360 = vunpack.c.l.b16 %v1331
      %v1361 = vunpack.c.l.b16 %v1332
      %v1362 = vunpack.c.l.b16 %v1333
      %v1363 = vunpack.c.l.b16 %v1334
      %v1364 = vunpack.c.l.b16 %v1335
      %v1365 = vunpack.c.l.b16 %v1336
      %v1366 = vunpack.c.l.b16 %v1337
      %vm1367 = vcmask 1041409
      %v1368 = vsel %vm1367, %v1360, %v1359
      %vm1369 = vcmask 1042434
      %v1370 = vsel %vm1369, %v1361, %v1368
      %vm1371 = vcmask 1043459
      %v1372 = vsel %vm1371, %v1362, %v1370
      %vm1373 = vcmask 1044484
      %v1374 = vsel %vm1373, %v1363, %v1372
      %vm1375 = vcmask 1045509
      %v1376 = vsel %vm1375, %v1364, %v1374
      %vm1377 = vcmask 1046534
      %v1378 = vsel %vm1377, %v1365, %v1376
      %vm1379 = vcmask 1047559
      %v1380 = vsel %vm1379, %v1366, %v1378
      %v1381 = vpack.c.b16 %v1380, %v1380
      %v1383 = vsel %vm1257, %v1381, 0
      %1385 = vmatprep.subr.bf16.mxu0 0
      %1386 = vmatpush1.bf16.msra.mxu0 0
      %1387 = vmatprep.subr.bf16.mxu0 0
      %1388 = vmatpush1.bf16.msra.mxu0 0
      %1389 = vmatprep.subr.bf16.mxu0 0
      %1390 = vmatpush1.bf16.msra.mxu0 0
      %1391 = vmatprep.subr.bf16.mxu0 0
      %1392 = vmatpush1.bf16.msra.mxu0 0
      %1393 = vmatprep.subr.bf16.mxu0 0
      %1394 = vmatpush1.bf16.msra.mxu0 0
      %1395 = vmatprep.subr.bf16.mxu0 0
      %1396 = vmatpush1.bf16.msra.mxu0 0
      %1397 = vmatprep.subr.bf16.mxu0 0
      %1398 = vmatpush1.bf16.msra.mxu0 %v1343
      %1399 = vmatprep.subr.bf16.mxu0 0
      %1400 = vmatpush1.bf16.msra.mxu0 %v1342
      %1401 = vmatprep.subr.bf16.mxu0 0
      %1402 = vmatpush2.bf16.msra.mxu0 0
      %1403 = vmatprep.subr.bf16.mxu0 0
      %1404 = vmatpush2.bf16.msra.mxu0 0
      %1405 = vmatprep.subr.bf16.mxu0 0
      %1406 = vmatpush2.bf16.msra.mxu0 0
      %1407 = vmatprep.subr.bf16.mxu0 0
      %1408 = vmatpush2.bf16.msra.mxu0 0
      %1409 = vmatprep.subr.bf16.mxu0 0
      %1410 = vmatpush2.bf16.msra.mxu0 0
      %1411 = vmatprep.subr.bf16.mxu0 0
      %1412 = vmatpush2.bf16.msra.mxu0 0
      %1413 = vmatprep.subr.bf16.mxu0 0
      %1414 = vmatpush2.bf16.msra.mxu0 0
      %1415 = vmatprep.subr.bf16.mxu0 0
      %1416 = vmatpush2.bf16.msra.mxu0 0
      %1417 = vmatprep.mubr.bf16.mxu0 0
      %1418 = vmatmul.mubr.bf16.gmra.mxu0 %v1383
      %v1419 = vpop.f32.mrf.mxu0
      %v1420 = vadd.f32 %v1349, %v1419
      %v1421 = vpop.f32.mrf.mxu0
      %v1422 = vpop.f32.mrf.mxu0
      %v1423 = vpop.f32.mrf.mxu0
      %1424 = vdwg.mxu0
      %v1425 = vtanh.pop %v1420
      %v1426 = vpack.c.bf16 %v1425, %v1425
      %v1427 = vld [vmem:[%s7] sm:$0xff]
      %v1428 = vpack.c.bf16 %v1427, %v1427
      %v1429 = vld [vmem:[%s8] sm:$0x1]
      %v1431 = vlaneseq
      %v1432 = vshrl.u32 %v1431, 7
      %v1433 = vsub.s32 0, %v1432
      %v1434 = vrot.slane %v1429, %v1433
      %vm1436 = vcmask 64512
      %v1438 = vsel %vm1436, %v1426, 0
      %vm1440 = vcmask 1043456
      %v1442 = vsel %vm1440, %v1428, 0
      %1444 = vmatprep.subr.bf16.mxu0 0
      %1445 = vmatpush1.bf16.msra.mxu0 0
      %1446 = vmatprep.subr.bf16.mxu0 0
      %1447 = vmatpush1.bf16.msra.mxu0 0
      %1448 = vmatprep.subr.bf16.mxu0 0
      %1449 = vmatpush1.bf16.msra.mxu0 0
      %1450 = vmatprep.subr.bf16.mxu0 0
      %1451 = vmatpush1.bf16.msra.mxu0 0
      %1452 = vmatprep.subr.bf16.mxu0 0
      %1453 = vmatpush1.bf16.msra.mxu0 0
      %1454 = vmatprep.subr.bf16.mxu0 0
      %1455 = vmatpush1.bf16.msra.mxu0 0
      %1456 = vmatprep.subr.bf16.mxu0 0
      %1457 = vmatpush1.bf16.msra.mxu0 0
      %1458 = vmatprep.subr.bf16.mxu0 0
      %1459 = vmatpush1.bf16.msra.mxu0 %v1442
      %1460 = vmatprep.subr.bf16.mxu0 0
      %1461 = vmatpush2.bf16.msra.mxu0 0
      %1462 = vmatprep.subr.bf16.mxu0 0
      %1463 = vmatpush2.bf16.msra.mxu0 0
      %1464 = vmatprep.subr.bf16.mxu0 0
      %1465 = vmatpush2.bf16.msra.mxu0 0
      %1466 = vmatprep.subr.bf16.mxu0 0
      %1467 = vmatpush2.bf16.msra.mxu0 0
      %1468 = vmatprep.subr.bf16.mxu0 0
      %1469 = vmatpush2.bf16.msra.mxu0 0
      %1470 = vmatprep.subr.bf16.mxu0 0
      %1471 = vmatpush2.bf16.msra.mxu0 0
      %1472 = vmatprep.subr.bf16.mxu0 0
      %1473 = vmatpush2.bf16.msra.mxu0 0
      %1474 = vmatprep.subr.bf16.mxu0 0
      %1475 = vmatpush2.bf16.msra.mxu0 0
      %1476 = vmatprep.mubr.bf16.mxu0 0
      %1477 = vmatmul.mubr.bf16.gmra.mxu0 %v1438
      %v1478 = vpop.f32.mrf.mxu0
      %v1479 = vadd.f32 %v1434, %v1478
      %v1480 = vpop.f32.mrf.mxu0
      %v1481 = vpop.f32.mrf.mxu0
      %v1482 = vpop.f32.mrf.mxu0
      %1483 = vdwg.mxu0
      %vm1484 = vcmask 31744
      %1485 = vst.msk [vmem:[%s344] sm:$0xff] %vm1484, %v1479
      %p1486 = scmp.lt.s32.totalorder %s20, 1
      %s1487 = scalar_select %p1486, %s20, 1
      %s1488 = smul.addr %s1487, 8
      %s1489 = scalar_lea.vmem %s9, %s1488
      // Predicated region
      $region57: #{textcnn_forward.1} parent=55 // pred_check
        %p1490 = pneg %p237
      $region58: #{textcnn_forward.1} parent=55 // pred_check_branch
        %1492 = sbr.rel (%p1490) target = $region60
      $region59: #{textcnn_forward.1} parent=55 // pred_region
        _
      $region60: #{textcnn_forward.1} parent=55 // pred_fallthru
        _
    $region56: #{textcnn_forward.1} parent=5 // pred_fallthru
      _
    %p1493 = scmp.le.s32.totalorder 2, %s15
    // Predicated region
    $region61: #{textcnn_forward.1} parent=5 // pred_check
      %p1494 = pneg %p1493
    $region62: #{textcnn_forward.1} parent=5 // pred_check_branch
      %1496 = sbr.rel (%p1494) target = $region64
    $region63: #{textcnn_forward.1} parent=5 // pred_region
      %s1497 = ssub.s32 %s15, 2
      // Predicated region
      $region65: #{textcnn_forward.1} parent=63 // pred_check
        %p1498 = pneg %p243
      $region66: #{textcnn_forward.1} parent=63 // pred_check_branch
        %1500 = sbr.rel (%p1498) target = $region68
      $region67: #{textcnn_forward.1} parent=63 // pred_region
        %p1501 = scmp.lt.s32.totalorder %s21, 1
        %s1502 = scalar_select %p1501, %s21, 1
        %s1503 = smul.addr %s1502, 8
        %s1504 = scalar_lea.vmem %s9, %s1503
      $region68: #{textcnn_forward.1} parent=63 // pred_fallthru
        _
    $region64: #{textcnn_forward.1} parent=5 // pred_fallthru
      _
  $region6: #{textcnn_forward.1} parent=0 // loop_footer
    %s19 = sadd.s32 1, %s15
  $region7: #{textcnn_forward.1} parent=0 // loop_footer_branch
    %14 = sbr.rel target = $region3
  $region8: #{textcnn_forward.1} parent=0 // loop_exit
    _

</llo_original>
